<compile_context>
chip_gen: v5e
topology: v5e:2x2
jax: 0.10.0
libtpu: 0.0.40
codegen_flags: <defaults>
</compile_context>

<pallas_src>
import functools

import numpy as np
import jax
import jax.numpy as jnp
from jax import lax
from jax.experimental import pallas as pl
from jax.experimental.pallas import tpu as pltpu


# ---------------------------------------------------------------------------
# Fused Pallas kernel: deconv(+skip passthrough) -> conv3x3+ReLU -> conv3x3+ReLU
# ---------------------------------------------------------------------------
def _unet_up_kernel(x_ref, wext_ref, bext_ref, w1_ref, b1_ref, w2_ref, b2_ref,
                    min_ref, mmid_ref, out_ref, *,
                    pw, w_mid, w_out, c_mid, c_out2):
    """One batch element. Channel-major: rows = channels, lanes = flat pixels.

    Pixel index layout: q = ypad*pw + xpad over the zero-padded (ph, pw) grid.
    Buffers carry extra zero margins so every 3x3 tap is a static lane slice.
    """
    x = x_ref[0]             # (4*Cin + Cskip, W_IN)  parity-split x1 + skip x2
    m_in = min_ref[...]      # (1, W_IN)  interior mask on the W_IN-wide grid
    m_mid = mmid_ref[...]    # (1, W_MID) interior mask on the W_MID-wide grid

    # --- ConvTranspose2d(k=2,s=2) + skip passthrough: ONE block-diag matmul ---
    # cat = [ W_up @ x1_parities ; I @ x2 ] with bias only inside the image.
    cat = jnp.dot(wext_ref[...], x, preferred_element_type=jnp.float32)
    cat = cat + bext_ref[...] * m_in           # borders / padded tail stay 0

    w1 = w1_ref[...]         # (9*Cmid, Cout+Cskip)
    w2 = w2_ref[...]         # (9*Cout2, Cmid)

    # --- conv1: 3x3, pad=1, over cat([up, x2], channel) + ReLU ---
    acc1 = jnp.zeros((c_mid, w_mid), jnp.float32) + b1_ref[...]
    t = 0
    for dy in range(3):
        for dx in range(3):
            off = dy * pw + dx                 # static lane offset in [0, 2*(pw+1)]
            acc1 = acc1 + jnp.dot(w1[t * c_mid:(t + 1) * c_mid, :],
                                  cat[:, off:off + w_mid],
                                  preferred_element_type=jnp.float32)
            t += 1
    h = jnp.maximum(acc1, 0.0) * m_mid         # re-zero conv padding border & tail

    # --- conv2: 3x3, pad=1 + ReLU ---
    acc2 = jnp.zeros((c_out2, w_out), jnp.float32) + b2_ref[...]
    t = 0
    for dy in range(3):
        for dx in range(3):
            off = dy * pw + dx
            acc2 = acc2 + jnp.dot(w2[t * c_out2:(t + 1) * c_out2, :],
                                  h[:, off:off + w_out],
                                  preferred_element_type=jnp.float32)
            t += 1
    out_ref[0] = jnp.maximum(acc2, 0.0)        # (Cout2, W_OUT) lane-dense store


# ---------------------------------------------------------------------------
# Wrapper: NCHW in -> NCHW out, single pallas_call
# ---------------------------------------------------------------------------
def unet_up_forward(params, inputs1_nchw, inputs2_nchw):
    x1 = inputs1_nchw
    x2 = inputs2_nchw
    N, Cin, H, W = x1.shape
    Cskip = x2.shape[1]
    Cout = params["up_w"].shape[1]
    Cmid = params["c1_w"].shape[0]
    Cout2 = params["c2_w"].shape[0]
    Ccat = Cout + Cskip            # channels after concat([up, x2])
    Cext = 4 * Cin + Cskip         # kernel input channels (parity-split + skip)

    UH, UW = 2 * H, 2 * W                       # upsampled spatial size
    PH, PW = UH + 2, UW + 2                     # +1 zero border each side (pad=1)
    W_TRUE = PH * PW                            # flattened padded grid size
    W_OUT = ((W_TRUE + 127) // 128) * 128       # lane-pad -> unmasked output stores
    HALO = PW + 1                               # max |tap shift| of a 3x3 conv
    W_MID = W_OUT + 2 * HALO                    # conv1 output / conv2 input width
    W_IN = W_MID + 2 * HALO                     # deconv output / conv1 input width
    MARG = 2 * HALO                             # grid offset inside W_IN buffers

    # --- input prep (KB-sized XLA glue; all heavy work happens in-kernel) ---
    # ConvTranspose2d(k=2,s=2) == parity-dependent 1x1 conv on the NN-upsampled
    # input; masking commutes with the matmul, so split parities here and the
    # deconv becomes part of one (Ccat, Cext) @ (Cext, W_IN) matmul in-kernel.
    x1_nn = jnp.repeat(jnp.repeat(x1, 2, axis=2), 2, axis=3)       # (N, Cin, UH, UW)
    pieces = []
    for ky in range(2):
        for kx in range(2):
            m = np.zeros((UH, UW), np.float32)
            m[ky::2, kx::2] = 1.0
            pieces.append(x1_nn * m)
    x1s = jnp.concatenate(pieces, axis=1)                          # (N, 4*Cin, UH, UW)

    # Skip connection: center-crop (if needed).
    H2, W2 = x2.shape[2], x2.shape[3]
    if (H2, W2) != (UH, UW):
        d2 = (H2 - UH) // 2
        d3 = (W2 - UW) // 2
        x2 = x2[:, :, d2:d2 + UH, d3:d3 + UW]

    # Stack [parity-split x1 ; skip x2] on channels, add zero border, flatten,
    # and lane-pad so every 3x3 tap is a static in-range slice.
    xin = jnp.concatenate([x1s, x2], axis=1)                       # (N, Cext, UH, UW)
    xin = jnp.pad(xin, ((0, 0), (0, 0), (1, 1), (1, 1)))
    xin = xin.reshape(N, Cext, W_TRUE)
    xin = jnp.pad(xin, ((0, 0), (0, 0), (MARG, W_IN - MARG - W_TRUE)))  # (N, Cext, W_IN)

    # --- repack weights (channel-major, one (Cout, Cin) slab per tap) ---
    wu = params["up_w"]                                            # (Cin, Cout, 2, 2)
    wup = jnp.concatenate(
        [wu[:, :, ky, kx].T for ky in range(2) for kx in range(2)], axis=1)  # (Cout, 4*Cin)
    # Block-diagonal extended weight: [[W_up, 0], [0, I_Cskip]] -> one matmul
    # produces cat([up, x2]) directly (skip rows pass through unchanged).
    wext = jnp.zeros((Ccat, Cext), jnp.float32)
    wext = wext.at[:Cout, :4 * Cin].set(wup)
    wext = wext.at[Cout:, 4 * Cin:].set(jnp.eye(Cskip, dtype=jnp.float32))
    bext = jnp.concatenate(
        [params["up_b"], jnp.zeros((Cskip,), jnp.float32)]).reshape(Ccat, 1)

    w1 = params["c1_w"]                                            # (Cmid, Ccat, 3, 3)
    w1p = jnp.concatenate(
        [w1[:, :, dy, dx] for dy in range(3) for dx in range(3)], axis=0)    # (9*Cmid, Ccat)
    w2 = params["c2_w"]                                            # (Cout2, Cmid, 3, 3)
    w2p = jnp.concatenate(
        [w2[:, :, dy, dx] for dy in range(3) for dx in range(3)], axis=0)    # (9*Cout2, Cmid)
    b1 = params["c1_b"].reshape(Cmid, 1)
    b2 = params["c2_b"].reshape(Cout2, 1)

    # --- interior masks (compile-time constants, no in-kernel int div/mod) ---
    inter = np.zeros((PH, PW), np.float32)
    inter[1:1 + UH, 1:1 + UW] = 1.0
    inter = inter.reshape(-1)
    m_in_np = np.zeros((1, W_IN), np.float32)
    m_in_np[0, MARG:MARG + W_TRUE] = inter
    m_mid_np = np.zeros((1, W_MID), np.float32)
    m_mid_np[0, HALO:HALO + W_TRUE] = inter
    m_in = jnp.asarray(m_in_np)
    m_mid = jnp.asarray(m_mid_np)

    kernel = functools.partial(
        _unet_up_kernel, pw=PW, w_mid=W_MID, w_out=W_OUT,
        c_mid=Cmid, c_out2=Cout2)

    flops = 2 * N * (Ccat * Cext * W_IN
                     + 9 * Cmid * Ccat * W_MID
                     + 9 * Cout2 * Cmid * W_OUT)
    bytes_accessed = 4 * (xin.size + N * Cout2 * W_OUT
                          + wext.size + w1p.size + w2p.size
                          + bext.size + b1.size + b2.size
                          + m_in.size + m_mid.size)

    out_flat = pl.pallas_call(
        kernel,
        out_shape=jax.ShapeDtypeStruct((N, Cout2, W_OUT), jnp.float32),
        grid_spec=pltpu.PrefetchScalarGridSpec(
            num_scalar_prefetch=0,
            grid=(N,),   # batch axis: >=2 parallel steps -> both v7x TCs used
            in_specs=[
                pl.BlockSpec((1, Cext, W_IN), lambda n: (n, 0, 0)),
                pl.BlockSpec((Ccat, Cext), lambda n: (0, 0)),
                pl.BlockSpec((Ccat, 1), lambda n: (0, 0)),
                pl.BlockSpec((9 * Cmid, Ccat), lambda n: (0, 0)),
                pl.BlockSpec((Cmid, 1), lambda n: (0, 0)),
                pl.BlockSpec((9 * Cout2, Cmid), lambda n: (0, 0)),
                pl.BlockSpec((Cout2, 1), lambda n: (0, 0)),
                pl.BlockSpec((1, W_IN), lambda n: (0, 0)),
                pl.BlockSpec((1, W_MID), lambda n: (0, 0)),
            ],
            out_specs=pl.BlockSpec((1, Cout2, W_OUT), lambda n: (n, 0, 0)),
        ),
        compiler_params=pltpu.CompilerParams(
            dimension_semantics=("parallel",)),
        cost_estimate=pl.CostEstimate(
            flops=int(flops), transcendentals=0,
            bytes_accessed=int(bytes_accessed)),
    )(xin, wext, bext, w1p, b1, w2p, b2, m_in, m_mid)

    # Drop the lane padding + zero border of the flattened grid (tiny XLA slice).
    out = out_flat[:, :, :W_TRUE].reshape(N, Cout2, PH, PW)[:, :, 1:1 + UH, 1:1 + UW]
    return out


# ---------------------------------------------------------------------------
# Pure-JAX reference (sanity check of the Pallas path)
# ---------------------------------------------------------------------------
def reference_forward(params, inputs1_nchw, inputs2_nchw):
    x1 = jnp.transpose(inputs1_nchw, (0, 2, 3, 1))
    x2 = jnp.transpose(inputs2_nchw, (0, 2, 3, 1))
    N, H, W, _ = x1.shape
    Cout = params["up_w"].shape[1]
    # ConvTranspose2d(k=2, stride=2): out[n, 2h+ky, 2w+kx, o]
    y = jnp.einsum("nhwc,cokl->nhkwlo", x1, params["up_w"])
    up = y.reshape(N, 2 * H, 2 * W, Cout) + params["up_b"]
    Hu, Wu = up.shape[1], up.shape[2]
    H2, W2 = x2.shape[1], x2.shape[2]
    if (H2, W2) != (Hu, Wu):
        d2 = (H2 - Hu) // 2
        d3 = (W2 - Wu) // 2
        x2 = x2[:, d2:d2 + Hu, d3:d3 + Wu, :]
    cat = jnp.concatenate([up, x2], axis=-1)

    def conv_relu(x, w_pt, b):
        w = jnp.transpose(w_pt, (2, 3, 1, 0))  # HWIO
        y = lax.conv_general_dilated(
            x, w, window_strides=(1, 1), padding=((1, 1), (1, 1)),
            dimension_numbers=("NHWC", "HWIO", "NHWC"))
        return jnp.maximum(y + b, 0.0)

    h = conv_relu(cat, params["c1_w"], params["c1_b"])
    out = conv_relu(h, params["c2_w"], params["c2_b"])
    return jnp.transpose(out, (0, 3, 1, 2))


# ---------------------------------------------------------------------------
if __name__ == "__main__":
    out_size = 4
    num_filt = 2 * out_size  # same_num_filt=False

    key = jax.random.PRNGKey(0)
    (k_i1, k_i2, k_uw, k_ub, k_c1w, k_c1b, k_c2w, k_c2b) = jax.random.split(key, 8)

    # NCHW inputs, matching the PyTorch module's conventions.
    inputs1 = jax.random.normal(k_i1, (2, num_filt, 8, 8), jnp.float32)
    inputs2 = jax.random.normal(k_i2, (2, out_size, 16, 16), jnp.float32)

    params = {
        # ConvTranspose2d weight layout: (Cin, Cout, kH, kW)
        "up_w": 0.1 * jax.random.normal(k_uw, (num_filt, out_size, 2, 2), jnp.float32),
        "up_b": 0.1 * jax.random.normal(k_ub, (out_size,), jnp.float32),
        # Conv2d weight layout: (Cout, Cin, kH, kW)
        "c1_w": 0.1 * jax.random.normal(k_c1w, (out_size, 2 * out_size, 3, 3), jnp.float32),
        "c1_b": 0.1 * jax.random.normal(k_c1b, (out_size,), jnp.float32),
        "c2_w": 0.1 * jax.random.normal(k_c2w, (out_size, out_size, 3, 3), jnp.float32),
        "c2_b": 0.1 * jax.random.normal(k_c2b, (out_size,), jnp.float32),
    }

    fwd = jax.jit(unet_up_forward)
    out = jax.block_until_ready(fwd(params, inputs1, inputs2))

    assert out.shape == (2, out_size, 16, 16), out.shape
    ref = jax.block_until_ready(reference_forward(params, inputs1, inputs2))
    assert jnp.allclose(out, ref, atol=1e-4, rtol=1e-4), \
        float(jnp.max(jnp.abs(out - ref)))

    print("KERNEL_OK")
</pallas_src>

<mosaic_0001>
module attributes {stable_mosaic.version = 11 : i64} {
  func.func @_unet_up_kernel(%arg0: i32, %arg1: memref<1x36x460xf32, #tpu.memory_space<vmem>>, %arg2: memref<8x36xf32, #tpu.memory_space<vmem>>, %arg3: memref<8x1xf32, #tpu.memory_space<vmem>>, %arg4: memref<36x8xf32, #tpu.memory_space<vmem>>, %arg5: memref<4x1xf32, #tpu.memory_space<vmem>>, %arg6: memref<36x4xf32, #tpu.memory_space<vmem>>, %arg7: memref<4x1xf32, #tpu.memory_space<vmem>>, %arg8: memref<1x460xf32, #tpu.memory_space<vmem>>, %arg9: memref<1x422xf32, #tpu.memory_space<vmem>>, %arg10: memref<1x4x384xf32, #tpu.memory_space<vmem>>) attributes {dimension_semantics = [#tpu.dimension_semantics<parallel>], iteration_bounds = array<i64: 2>, scalar_prefetch = 0 : i64, scratch_operands = 0 : i64, tpu.core_type = #tpu.core_type<tc>, window_params = [{transform_indices = @transform_0, window_bounds = array<i64: 1, 36, 460>}, {pipeline_mode = #tpu.pipeline_mode<synchronous>, transform_indices = @transform_1, window_bounds = array<i64: 8, 36>}, {pipeline_mode = #tpu.pipeline_mode<synchronous>, transform_indices = @transform_2, window_bounds = array<i64: 8, 1>}, {pipeline_mode = #tpu.pipeline_mode<synchronous>, transform_indices = @transform_3, window_bounds = array<i64: 36, 8>}, {pipeline_mode = #tpu.pipeline_mode<synchronous>, transform_indices = @transform_4, window_bounds = array<i64: 4, 1>}, {pipeline_mode = #tpu.pipeline_mode<synchronous>, transform_indices = @transform_5, window_bounds = array<i64: 36, 4>}, {pipeline_mode = #tpu.pipeline_mode<synchronous>, transform_indices = @transform_6, window_bounds = array<i64: 4, 1>}, {pipeline_mode = #tpu.pipeline_mode<synchronous>, transform_indices = @transform_7, window_bounds = array<i64: 1, 460>}, {pipeline_mode = #tpu.pipeline_mode<synchronous>, transform_indices = @transform_8, window_bounds = array<i64: 1, 422>}, {transform_indices = @transform_9, window_bounds = array<i64: 1, 4, 384>}]} {
    %c0 = arith.constant 0 : index
    %c0_0 = arith.constant 0 : index
    %c0_1 = arith.constant 0 : index
    %0 = vector.load %arg1[%c0, %c0_0, %c0_1] : memref<1x36x460xf32, #tpu.memory_space<vmem>>, vector<1x36x460xf32>
    %1 = vector.shape_cast %0 : vector<1x36x460xf32> to vector<36x460xf32>
    %c0_2 = arith.constant 0 : index
    %c0_3 = arith.constant 0 : index
    %2 = vector.load %arg8[%c0_2, %c0_3] : memref<1x460xf32, #tpu.memory_space<vmem>>, vector<1x460xf32>
    %c0_4 = arith.constant 0 : index
    %c0_5 = arith.constant 0 : index
    %3 = vector.load %arg9[%c0_4, %c0_5] : memref<1x422xf32, #tpu.memory_space<vmem>>, vector<1x422xf32>
    %c0_6 = arith.constant 0 : index
    %c0_7 = arith.constant 0 : index
    %4 = vector.load %arg2[%c0_6, %c0_7] : memref<8x36xf32, #tpu.memory_space<vmem>>, vector<8x36xf32>
    %cst = arith.constant dense<0.000000e+00> : vector<8x460xf32>
    %5 = tpu.matmul %4, %1, %cst {dimension_numbers = #tpu.dot_dimension_numbers<[1], [0], [0], [1], [0, 0, 1, 1], [], []>} : vector<8x36xf32>, vector<36x460xf32>, vector<8x460xf32> -> vector<8x460xf32>
    %c0_8 = arith.constant 0 : index
    %c0_9 = arith.constant 0 : index
    %6 = vector.load %arg3[%c0_8, %c0_9] : memref<8x1xf32, #tpu.memory_space<vmem>>, vector<8x1xf32>
    %7 = vector.broadcast %6 : vector<8x1xf32> to vector<8x460xf32>
    %8 = vector.broadcast %2 : vector<1x460xf32> to vector<8x460xf32>
    %9 = arith.mulf %7, %8 : vector<8x460xf32>
    %10 = arith.addf %5, %9 : vector<8x460xf32>
    %c0_10 = arith.constant 0 : index
    %c0_11 = arith.constant 0 : index
    %11 = vector.load %arg4[%c0_10, %c0_11] : memref<36x8xf32, #tpu.memory_space<vmem>>, vector<36x8xf32>
    %c0_12 = arith.constant 0 : index
    %c0_13 = arith.constant 0 : index
    %12 = vector.load %arg6[%c0_12, %c0_13] : memref<36x4xf32, #tpu.memory_space<vmem>>, vector<36x4xf32>
    %cst_14 = arith.constant 0.000000e+00 : f32
    %13 = vector.broadcast %cst_14 : f32 to vector<4x422xf32>
    %c0_15 = arith.constant 0 : index
    %c0_16 = arith.constant 0 : index
    %14 = vector.load %arg5[%c0_15, %c0_16] : memref<4x1xf32, #tpu.memory_space<vmem>>, vector<4x1xf32>
    %15 = vector.broadcast %14 : vector<4x1xf32> to vector<4x422xf32>
    %16 = arith.addf %13, %15 : vector<4x422xf32>
    %17 = vector.extract_strided_slice %11 {offsets = [0, 0], sizes = [4, 8], strides = [1, 1]} : vector<36x8xf32> to vector<4x8xf32>
    %18 = vector.extract_strided_slice %10 {offsets = [0, 0], sizes = [8, 422], strides = [1, 1]} : vector<8x460xf32> to vector<8x422xf32>
    %cst_17 = arith.constant dense<0.000000e+00> : vector<4x422xf32>
    %19 = tpu.matmul %17, %18, %cst_17 {dimension_numbers = #tpu.dot_dimension_numbers<[1], [0], [0], [1], [0, 0, 1, 1], [], []>} : vector<4x8xf32>, vector<8x422xf32>, vector<4x422xf32> -> vector<4x422xf32>
    %20 = arith.addf %16, %19 : vector<4x422xf32>
    %21 = vector.extract_strided_slice %11 {offsets = [4, 0], sizes = [4, 8], strides = [1, 1]} : vector<36x8xf32> to vector<4x8xf32>
    %22 = vector.extract_strided_slice %10 {offsets = [0, 1], sizes = [8, 422], strides = [1, 1]} : vector<8x460xf32> to vector<8x422xf32>
    %cst_18 = arith.constant dense<0.000000e+00> : vector<4x422xf32>
    %23 = tpu.matmul %21, %22, %cst_18 {dimension_numbers = #tpu.dot_dimension_numbers<[1], [0], [0], [1], [0, 0, 1, 1], [], []>} : vector<4x8xf32>, vector<8x422xf32>, vector<4x422xf32> -> vector<4x422xf32>
    %24 = arith.addf %20, %23 : vector<4x422xf32>
    %25 = vector.extract_strided_slice %11 {offsets = [8, 0], sizes = [4, 8], strides = [1, 1]} : vector<36x8xf32> to vector<4x8xf32>
    %26 = vector.extract_strided_slice %10 {offsets = [0, 2], sizes = [8, 422], strides = [1, 1]} : vector<8x460xf32> to vector<8x422xf32>
    %cst_19 = arith.constant dense<0.000000e+00> : vector<4x422xf32>
    %27 = tpu.matmul %25, %26, %cst_19 {dimension_numbers = #tpu.dot_dimension_numbers<[1], [0], [0], [1], [0, 0, 1, 1], [], []>} : vector<4x8xf32>, vector<8x422xf32>, vector<4x422xf32> -> vector<4x422xf32>
    %28 = arith.addf %24, %27 : vector<4x422xf32>
    %29 = vector.extract_strided_slice %11 {offsets = [12, 0], sizes = [4, 8], strides = [1, 1]} : vector<36x8xf32> to vector<4x8xf32>
    %30 = vector.extract_strided_slice %10 {offsets = [0, 18], sizes = [8, 422], strides = [1, 1]} : vector<8x460xf32> to vector<8x422xf32>
    %cst_20 = arith.constant dense<0.000000e+00> : vector<4x422xf32>
    %31 = tpu.matmul %29, %30, %cst_20 {dimension_numbers = #tpu.dot_dimension_numbers<[1], [0], [0], [1], [0, 0, 1, 1], [], []>} : vector<4x8xf32>, vector<8x422xf32>, vector<4x422xf32> -> vector<4x422xf32>
    %32 = arith.addf %28, %31 : vector<4x422xf32>
    %33 = vector.extract_strided_slice %11 {offsets = [16, 0], sizes = [4, 8], strides = [1, 1]} : vector<36x8xf32> to vector<4x8xf32>
    %34 = vector.extract_strided_slice %10 {offsets = [0, 19], sizes = [8, 422], strides = [1, 1]} : vector<8x460xf32> to vector<8x422xf32>
    %cst_21 = arith.constant dense<0.000000e+00> : vector<4x422xf32>
    %35 = tpu.matmul %33, %34, %cst_21 {dimension_numbers = #tpu.dot_dimension_numbers<[1], [0], [0], [1], [0, 0, 1, 1], [], []>} : vector<4x8xf32>, vector<8x422xf32>, vector<4x422xf32> -> vector<4x422xf32>
    %36 = arith.addf %32, %35 : vector<4x422xf32>
    %37 = vector.extract_strided_slice %11 {offsets = [20, 0], sizes = [4, 8], strides = [1, 1]} : vector<36x8xf32> to vector<4x8xf32>
    %38 = vector.extract_strided_slice %10 {offsets = [0, 20], sizes = [8, 422], strides = [1, 1]} : vector<8x460xf32> to vector<8x422xf32>
    %cst_22 = arith.constant dense<0.000000e+00> : vector<4x422xf32>
    %39 = tpu.matmul %37, %38, %cst_22 {dimension_numbers = #tpu.dot_dimension_numbers<[1], [0], [0], [1], [0, 0, 1, 1], [], []>} : vector<4x8xf32>, vector<8x422xf32>, vector<4x422xf32> -> vector<4x422xf32>
    %40 = arith.addf %36, %39 : vector<4x422xf32>
    %41 = vector.extract_strided_slice %11 {offsets = [24, 0], sizes = [4, 8], strides = [1, 1]} : vector<36x8xf32> to vector<4x8xf32>
    %42 = vector.extract_strided_slice %10 {offsets = [0, 36], sizes = [8, 422], strides = [1, 1]} : vector<8x460xf32> to vector<8x422xf32>
    %cst_23 = arith.constant dense<0.000000e+00> : vector<4x422xf32>
    %43 = tpu.matmul %41, %42, %cst_23 {dimension_numbers = #tpu.dot_dimension_numbers<[1], [0], [0], [1], [0, 0, 1, 1], [], []>} : vector<4x8xf32>, vector<8x422xf32>, vector<4x422xf32> -> vector<4x422xf32>
    %44 = arith.addf %40, %43 : vector<4x422xf32>
    %45 = vector.extract_strided_slice %11 {offsets = [28, 0], sizes = [4, 8], strides = [1, 1]} : vector<36x8xf32> to vector<4x8xf32>
    %46 = vector.extract_strided_slice %10 {offsets = [0, 37], sizes = [8, 422], strides = [1, 1]} : vector<8x460xf32> to vector<8x422xf32>
    %cst_24 = arith.constant dense<0.000000e+00> : vector<4x422xf32>
    %47 = tpu.matmul %45, %46, %cst_24 {dimension_numbers = #tpu.dot_dimension_numbers<[1], [0], [0], [1], [0, 0, 1, 1], [], []>} : vector<4x8xf32>, vector<8x422xf32>, vector<4x422xf32> -> vector<4x422xf32>
    %48 = arith.addf %44, %47 : vector<4x422xf32>
    %49 = vector.extract_strided_slice %11 {offsets = [32, 0], sizes = [4, 8], strides = [1, 1]} : vector<36x8xf32> to vector<4x8xf32>
    %50 = vector.extract_strided_slice %10 {offsets = [0, 38], sizes = [8, 422], strides = [1, 1]} : vector<8x460xf32> to vector<8x422xf32>
    %cst_25 = arith.constant dense<0.000000e+00> : vector<4x422xf32>
    %51 = tpu.matmul %49, %50, %cst_25 {dimension_numbers = #tpu.dot_dimension_numbers<[1], [0], [0], [1], [0, 0, 1, 1], [], []>} : vector<4x8xf32>, vector<8x422xf32>, vector<4x422xf32> -> vector<4x422xf32>
    %52 = arith.addf %48, %51 : vector<4x422xf32>
    %cst_26 = arith.constant 0.000000e+00 : f32
    %53 = vector.broadcast %cst_26 : f32 to vector<4x422xf32>
    %54 = arith.maximumf %52, %53 : vector<4x422xf32>
    %55 = vector.broadcast %3 : vector<1x422xf32> to vector<4x422xf32>
    %56 = arith.mulf %54, %55 : vector<4x422xf32>
    %cst_27 = arith.constant 0.000000e+00 : f32
    %57 = vector.broadcast %cst_27 : f32 to vector<4x384xf32>
    %c0_28 = arith.constant 0 : index
    %c0_29 = arith.constant 0 : index
    %58 = vector.load %arg7[%c0_28, %c0_29] : memref<4x1xf32, #tpu.memory_space<vmem>>, vector<4x1xf32>
    %59 = vector.broadcast %58 : vector<4x1xf32> to vector<4x384xf32>
    %60 = arith.addf %57, %59 : vector<4x384xf32>
    %61 = vector.extract_strided_slice %12 {offsets = [0, 0], sizes = [4, 4], strides = [1, 1]} : vector<36x4xf32> to vector<4x4xf32>
    %62 = vector.extract_strided_slice %56 {offsets = [0, 0], sizes = [4, 384], strides = [1, 1]} : vector<4x422xf32> to vector<4x384xf32>
    %cst_30 = arith.constant dense<0.000000e+00> : vector<4x384xf32>
    %63 = tpu.matmul %61, %62, %cst_30 {dimension_numbers = #tpu.dot_dimension_numbers<[1], [0], [0], [1], [0, 0, 1, 1], [], []>} : vector<4x4xf32>, vector<4x384xf32>, vector<4x384xf32> -> vector<4x384xf32>
    %64 = arith.addf %60, %63 : vector<4x384xf32>
    %65 = vector.extract_strided_slice %12 {offsets = [4, 0], sizes = [4, 4], strides = [1, 1]} : vector<36x4xf32> to vector<4x4xf32>
    %66 = vector.extract_strided_slice %56 {offsets = [0, 1], sizes = [4, 384], strides = [1, 1]} : vector<4x422xf32> to vector<4x384xf32>
    %cst_31 = arith.constant dense<0.000000e+00> : vector<4x384xf32>
    %67 = tpu.matmul %65, %66, %cst_31 {dimension_numbers = #tpu.dot_dimension_numbers<[1], [0], [0], [1], [0, 0, 1, 1], [], []>} : vector<4x4xf32>, vector<4x384xf32>, vector<4x384xf32> -> vector<4x384xf32>
    %68 = arith.addf %64, %67 : vector<4x384xf32>
    %69 = vector.extract_strided_slice %12 {offsets = [8, 0], sizes = [4, 4], strides = [1, 1]} : vector<36x4xf32> to vector<4x4xf32>
    %70 = vector.extract_strided_slice %56 {offsets = [0, 2], sizes = [4, 384], strides = [1, 1]} : vector<4x422xf32> to vector<4x384xf32>
    %cst_32 = arith.constant dense<0.000000e+00> : vector<4x384xf32>
    %71 = tpu.matmul %69, %70, %cst_32 {dimension_numbers = #tpu.dot_dimension_numbers<[1], [0], [0], [1], [0, 0, 1, 1], [], []>} : vector<4x4xf32>, vector<4x384xf32>, vector<4x384xf32> -> vector<4x384xf32>
    %72 = arith.addf %68, %71 : vector<4x384xf32>
    %73 = vector.extract_strided_slice %12 {offsets = [12, 0], sizes = [4, 4], strides = [1, 1]} : vector<36x4xf32> to vector<4x4xf32>
    %74 = vector.extract_strided_slice %56 {offsets = [0, 18], sizes = [4, 384], strides = [1, 1]} : vector<4x422xf32> to vector<4x384xf32>
    %cst_33 = arith.constant dense<0.000000e+00> : vector<4x384xf32>
    %75 = tpu.matmul %73, %74, %cst_33 {dimension_numbers = #tpu.dot_dimension_numbers<[1], [0], [0], [1], [0, 0, 1, 1], [], []>} : vector<4x4xf32>, vector<4x384xf32>, vector<4x384xf32> -> vector<4x384xf32>
    %76 = arith.addf %72, %75 : vector<4x384xf32>
    %77 = vector.extract_strided_slice %12 {offsets = [16, 0], sizes = [4, 4], strides = [1, 1]} : vector<36x4xf32> to vector<4x4xf32>
    %78 = vector.extract_strided_slice %56 {offsets = [0, 19], sizes = [4, 384], strides = [1, 1]} : vector<4x422xf32> to vector<4x384xf32>
    %cst_34 = arith.constant dense<0.000000e+00> : vector<4x384xf32>
    %79 = tpu.matmul %77, %78, %cst_34 {dimension_numbers = #tpu.dot_dimension_numbers<[1], [0], [0], [1], [0, 0, 1, 1], [], []>} : vector<4x4xf32>, vector<4x384xf32>, vector<4x384xf32> -> vector<4x384xf32>
    %80 = arith.addf %76, %79 : vector<4x384xf32>
    %81 = vector.extract_strided_slice %12 {offsets = [20, 0], sizes = [4, 4], strides = [1, 1]} : vector<36x4xf32> to vector<4x4xf32>
    %82 = vector.extract_strided_slice %56 {offsets = [0, 20], sizes = [4, 384], strides = [1, 1]} : vector<4x422xf32> to vector<4x384xf32>
    %cst_35 = arith.constant dense<0.000000e+00> : vector<4x384xf32>
    %83 = tpu.matmul %81, %82, %cst_35 {dimension_numbers = #tpu.dot_dimension_numbers<[1], [0], [0], [1], [0, 0, 1, 1], [], []>} : vector<4x4xf32>, vector<4x384xf32>, vector<4x384xf32> -> vector<4x384xf32>
    %84 = arith.addf %80, %83 : vector<4x384xf32>
    %85 = vector.extract_strided_slice %12 {offsets = [24, 0], sizes = [4, 4], strides = [1, 1]} : vector<36x4xf32> to vector<4x4xf32>
    %86 = vector.extract_strided_slice %56 {offsets = [0, 36], sizes = [4, 384], strides = [1, 1]} : vector<4x422xf32> to vector<4x384xf32>
    %cst_36 = arith.constant dense<0.000000e+00> : vector<4x384xf32>
    %87 = tpu.matmul %85, %86, %cst_36 {dimension_numbers = #tpu.dot_dimension_numbers<[1], [0], [0], [1], [0, 0, 1, 1], [], []>} : vector<4x4xf32>, vector<4x384xf32>, vector<4x384xf32> -> vector<4x384xf32>
    %88 = arith.addf %84, %87 : vector<4x384xf32>
    %89 = vector.extract_strided_slice %12 {offsets = [28, 0], sizes = [4, 4], strides = [1, 1]} : vector<36x4xf32> to vector<4x4xf32>
    %90 = vector.extract_strided_slice %56 {offsets = [0, 37], sizes = [4, 384], strides = [1, 1]} : vector<4x422xf32> to vector<4x384xf32>
    %cst_37 = arith.constant dense<0.000000e+00> : vector<4x384xf32>
    %91 = tpu.matmul %89, %90, %cst_37 {dimension_numbers = #tpu.dot_dimension_numbers<[1], [0], [0], [1], [0, 0, 1, 1], [], []>} : vector<4x4xf32>, vector<4x384xf32>, vector<4x384xf32> -> vector<4x384xf32>
    %92 = arith.addf %88, %91 : vector<4x384xf32>
    %93 = vector.extract_strided_slice %12 {offsets = [32, 0], sizes = [4, 4], strides = [1, 1]} : vector<36x4xf32> to vector<4x4xf32>
    %94 = vector.extract_strided_slice %56 {offsets = [0, 38], sizes = [4, 384], strides = [1, 1]} : vector<4x422xf32> to vector<4x384xf32>
    %cst_38 = arith.constant dense<0.000000e+00> : vector<4x384xf32>
    %95 = tpu.matmul %93, %94, %cst_38 {dimension_numbers = #tpu.dot_dimension_numbers<[1], [0], [0], [1], [0, 0, 1, 1], [], []>} : vector<4x4xf32>, vector<4x384xf32>, vector<4x384xf32> -> vector<4x384xf32>
    %96 = arith.addf %92, %95 : vector<4x384xf32>
    %cst_39 = arith.constant 0.000000e+00 : f32
    %97 = vector.broadcast %cst_39 : f32 to vector<4x384xf32>
    %98 = arith.maximumf %96, %97 : vector<4x384xf32>
    %c0_40 = arith.constant 0 : index
    %c0_41 = arith.constant 0 : index
    %c0_42 = arith.constant 0 : index
    %99 = vector.load %arg10[%c0_40, %c0_41, %c0_42] : memref<1x4x384xf32, #tpu.memory_space<vmem>>, vector<1x4x384xf32>
    %100 = vector.shape_cast %99 : vector<1x4x384xf32> to vector<4x384xf32>
    %101 = vector.shape_cast %98 : vector<4x384xf32> to vector<1x4x384xf32>
    tpu.vector_store %arg10[%c0_40, %c0_41, %c0_42], %101 {strides = array<i32>} : memref<1x4x384xf32, #tpu.memory_space<vmem>>, vector<1x4x384xf32>,
    return
  }
  func.func @transform_0(%arg0: i32) -> (i32, i32, i32) {
    %c0_i32 = arith.constant 0 : i32
    %c0_i32_0 = arith.constant 0 : i32
    %c0_i32_1 = arith.constant 0 : i32
    return %arg0, %c0_i32, %c0_i32_0 : i32, i32, i32
  }
  func.func @transform_1(%arg0: i32) -> (i32, i32) {
    %c0_i32 = arith.constant 0 : i32
    %c0_i32_0 = arith.constant 0 : i32
    %c0_i32_1 = arith.constant 0 : i32
    return %c0_i32, %c0_i32_0 : i32, i32
  }
  func.func @transform_2(%arg0: i32) -> (i32, i32) {
    %c0_i32 = arith.constant 0 : i32
    %c0_i32_0 = arith.constant 0 : i32
    %c0_i32_1 = arith.constant 0 : i32
    return %c0_i32, %c0_i32_0 : i32, i32
  }
  func.func @transform_3(%arg0: i32) -> (i32, i32) {
    %c0_i32 = arith.constant 0 : i32
    %c0_i32_0 = arith.constant 0 : i32
    %c0_i32_1 = arith.constant 0 : i32
    return %c0_i32, %c0_i32_0 : i32, i32
  }
  func.func @transform_4(%arg0: i32) -> (i32, i32) {
    %c0_i32 = arith.constant 0 : i32
    %c0_i32_0 = arith.constant 0 : i32
    %c0_i32_1 = arith.constant 0 : i32
    return %c0_i32, %c0_i32_0 : i32, i32
  }
  func.func @transform_5(%arg0: i32) -> (i32, i32) {
    %c0_i32 = arith.constant 0 : i32
    %c0_i32_0 = arith.constant 0 : i32
    %c0_i32_1 = arith.constant 0 : i32
    return %c0_i32, %c0_i32_0 : i32, i32
  }
  func.func @transform_6(%arg0: i32) -> (i32, i32) {
    %c0_i32 = arith.constant 0 : i32
    %c0_i32_0 = arith.constant 0 : i32
    %c0_i32_1 = arith.constant 0 : i32
    return %c0_i32, %c0_i32_0 : i32, i32
  }
  func.func @transform_7(%arg0: i32) -> (i32, i32) {
    %c0_i32 = arith.constant 0 : i32
    %c0_i32_0 = arith.constant 0 : i32
    %c0_i32_1 = arith.constant 0 : i32
    return %c0_i32, %c0_i32_0 : i32, i32
  }
  func.func @transform_8(%arg0: i32) -> (i32, i32) {
    %c0_i32 = arith.constant 0 : i32
    %c0_i32_0 = arith.constant 0 : i32
    %c0_i32_1 = arith.constant 0 : i32
    return %c0_i32, %c0_i32_0 : i32, i32
  }
  func.func @transform_9(%arg0: i32) -> (i32, i32, i32) {
    %c0_i32 = arith.constant 0 : i32
    %c0_i32_0 = arith.constant 0 : i32
    %c0_i32_1 = arith.constant 0 : i32
    return %arg0, %c0_i32, %c0_i32_0 : i32, i32, i32
  }
}

</mosaic_0001>

<llo_original>
// kernel: unet_up_forward.1
$region0: #{unet_up_forward.1}
  #allocation0 [shape = 'u32[]', space=smem, size = 0x4, offset = 0x4, fixed_abs, tag = 'smem constant byte address 0x4 - core index']
  #allocation1 [shape = 'u32[72,128]{1,0:T(1,128)}', space=vmem, size = 0x9000, scoped, tag = 'internal scratch']
  %s0 = inlined_call_operand.vmem [shape: f32[2,36,460], index: 0, kind: input, shape index: {}]
  %s1 = inlined_call_operand.vmem [shape: f32[8,36], index: 1, kind: input, shape index: {}]
  %s2 = inlined_call_operand.vmem [shape: f32[8,1], index: 2, kind: input, shape index: {}]
  %s3 = inlined_call_operand.vmem [shape: f32[36,8], index: 3, kind: input, shape index: {}]
  %s4 = inlined_call_operand.vmem [shape: f32[4,1], index: 4, kind: input, shape index: {}]
  %s5 = inlined_call_operand.vmem [shape: f32[36,4], index: 5, kind: input, shape index: {}]
  %s6 = inlined_call_operand.vmem [shape: f32[4,1], index: 6, kind: input, shape index: {}]
  %s7 = inlined_call_operand.vmem [shape: f32[1,460], index: 7, kind: input, shape index: {}]
  %s8 = inlined_call_operand.vmem [shape: f32[1,422], index: 8, kind: input, shape index: {}]
  %s9 = inlined_call_operand.vmem [shape: f32[2,4,384], index: 9, kind: output, shape index: {}]
  %s10 = sld [smem:[#allocation0]]
  $region69: #{unet_up_forward.1} parent=0
    _
  %s12 = ssub.s32 1, %s10
  %s13 = scalar_select 0, %s12, %s10
  loop: start=0, step=1, limit=4
  $region2: #{unet_up_forward.1} parent=0 // loop_pre_header
    _
  $region3: #{unet_up_forward.1} parent=0 // loop_header
    %s15 = sphi 0, %s19
    %p16 = scmp.ge.s32.totalorder %s15, 4
    %s25 = sphi 0, %s27
    %s28 = sphi 0, %s25
    %s29 = sphi 0, %s28
    %s45 = sphi 0, %s29
    %s49 = sphi 0, %s49
    %s51 = sphi 0, %s49
    %s52 = sphi 0, %s51
    %s66 = sphi 0, %s52
    %s70 = sphi 0, %s70
    %s72 = sphi 0, %s70
    %s73 = sphi 0, %s72
    %s87 = sphi 0, %s73
    %s91 = sphi 0, %s91
    %s93 = sphi 0, %s91
    %s94 = sphi 0, %s93
    %s108 = sphi 0, %s94
    %s112 = sphi 0, %s112
    %s114 = sphi 0, %s112
    %s115 = sphi 0, %s114
    %s129 = sphi 0, %s115
    %s133 = sphi 0, %s133
    %s135 = sphi 0, %s133
    %s136 = sphi 0, %s135
    %s150 = sphi 0, %s136
    %s154 = sphi 0, %s154
    %s156 = sphi 0, %s154
    %s157 = sphi 0, %s156
    %s171 = sphi 0, %s157
    %s175 = sphi 0, %s175
    %s177 = sphi 0, %s175
    %s178 = sphi 0, %s177
    %s192 = sphi 0, %s178
    %s196 = sphi 0, %s196
    %s198 = sphi 0, %s196
    %s199 = sphi 0, %s198
    %s213 = sphi 0, %s199
    %s219 = sphi 0, %s221
    %s222 = sphi 0, %s219
    %s223 = sphi 0, %s222
    %s239 = sphi 0, %s223
  $region4: #{unet_up_forward.1} parent=0 // loop_header_branch
    %18 = sbr.rel (%p16) target = $region8
  $region5: #{unet_up_forward.1} parent=0 // loop_body
    %s20 = ssub.s32 %s15, 1
    %s21 = ssub.s32 %s15, 2
    %s22 = sadd.s32 %s15, 1
    %s23 = ssub.s32 %s15, %s22
    %p24 = scmp.eq.s32.totalorder %s23, 0
    %s26 = sadd.s32 %s25, 1
    %s27 = scalar_select %p24, %s25, %s26
    %p30 = pneg %p24
    %p31 = scmp.eq.s32.totalorder %s15, 1
    %p32 = por %p30, %p31
    %p33 = scmp.ne.s32.totalorder %s25, %s28
    %p34 = scmp.eq.s32.totalorder %s15, 0
    %p35 = por %p33, %p34
    %p36 = scmp.ne.s32.totalorder %s25, %s28
    %p37 = scmp.eq.s32.totalorder %s20, 1
    %p38 = por %p36, %p37
    %p39 = scmp.ne.s32.totalorder %s28, %s29
    %p40 = scmp.eq.s32.totalorder %s20, 0
    %p41 = por %p39, %p40
    %p42 = scmp.ne.s32.totalorder %s28, %s29
    %p43 = scmp.eq.s32.totalorder %s21, 1
    %p44 = por %p42, %p43
    %p46 = scmp.ne.s32.totalorder %s29, %s45
    %p47 = scmp.eq.s32.totalorder %s21, 0
    %p48 = por %p46, %p47
    %s50 = sadd.s32 %s49, 1
    %p53 = scmp.eq.s32.totalorder %s15, 1
    %p54 = scmp.ne.s32.totalorder %s49, %s51
    %p55 = scmp.eq.s32.totalorder %s15, 0
    %p56 = por %p54, %p55
    %p57 = scmp.ne.s32.totalorder %s49, %s51
    %p58 = scmp.eq.s32.totalorder %s20, 1
    %p59 = por %p57, %p58
    %p60 = scmp.ne.s32.totalorder %s51, %s52
    %p61 = scmp.eq.s32.totalorder %s20, 0
    %p62 = por %p60, %p61
    %p63 = scmp.ne.s32.totalorder %s51, %s52
    %p64 = scmp.eq.s32.totalorder %s21, 1
    %p65 = por %p63, %p64
    %p67 = scmp.ne.s32.totalorder %s52, %s66
    %p68 = scmp.eq.s32.totalorder %s21, 0
    %p69 = por %p67, %p68
    %s71 = sadd.s32 %s70, 1
    %p74 = scmp.eq.s32.totalorder %s15, 1
    %p75 = scmp.ne.s32.totalorder %s70, %s72
    %p76 = scmp.eq.s32.totalorder %s15, 0
    %p77 = por %p75, %p76
    %p78 = scmp.ne.s32.totalorder %s70, %s72
    %p79 = scmp.eq.s32.totalorder %s20, 1
    %p80 = por %p78, %p79
    %p81 = scmp.ne.s32.totalorder %s72, %s73
    %p82 = scmp.eq.s32.totalorder %s20, 0
    %p83 = por %p81, %p82
    %p84 = scmp.ne.s32.totalorder %s72, %s73
    %p85 = scmp.eq.s32.totalorder %s21, 1
    %p86 = por %p84, %p85
    %p88 = scmp.ne.s32.totalorder %s73, %s87
    %p89 = scmp.eq.s32.totalorder %s21, 0
    %p90 = por %p88, %p89
    %s92 = sadd.s32 %s91, 1
    %p95 = scmp.eq.s32.totalorder %s15, 1
    %p96 = scmp.ne.s32.totalorder %s91, %s93
    %p97 = scmp.eq.s32.totalorder %s15, 0
    %p98 = por %p96, %p97
    %p99 = scmp.ne.s32.totalorder %s91, %s93
    %p100 = scmp.eq.s32.totalorder %s20, 1
    %p101 = por %p99, %p100
    %p102 = scmp.ne.s32.totalorder %s93, %s94
    %p103 = scmp.eq.s32.totalorder %s20, 0
    %p104 = por %p102, %p103
    %p105 = scmp.ne.s32.totalorder %s93, %s94
    %p106 = scmp.eq.s32.totalorder %s21, 1
    %p107 = por %p105, %p106
    %p109 = scmp.ne.s32.totalorder %s94, %s108
    %p110 = scmp.eq.s32.totalorder %s21, 0
    %p111 = por %p109, %p110
    %s113 = sadd.s32 %s112, 1
    %p116 = scmp.eq.s32.totalorder %s15, 1
    %p117 = scmp.ne.s32.totalorder %s112, %s114
    %p118 = scmp.eq.s32.totalorder %s15, 0
    %p119 = por %p117, %p118
    %p120 = scmp.ne.s32.totalorder %s112, %s114
    %p121 = scmp.eq.s32.totalorder %s20, 1
    %p122 = por %p120, %p121
    %p123 = scmp.ne.s32.totalorder %s114, %s115
    %p124 = scmp.eq.s32.totalorder %s20, 0
    %p125 = por %p123, %p124
    %p126 = scmp.ne.s32.totalorder %s114, %s115
    %p127 = scmp.eq.s32.totalorder %s21, 1
    %p128 = por %p126, %p127
    %p130 = scmp.ne.s32.totalorder %s115, %s129
    %p131 = scmp.eq.s32.totalorder %s21, 0
    %p132 = por %p130, %p131
    %s134 = sadd.s32 %s133, 1
    %p137 = scmp.eq.s32.totalorder %s15, 1
    %p138 = scmp.ne.s32.totalorder %s133, %s135
    %p139 = scmp.eq.s32.totalorder %s15, 0
    %p140 = por %p138, %p139
    %p141 = scmp.ne.s32.totalorder %s133, %s135
    %p142 = scmp.eq.s32.totalorder %s20, 1
    %p143 = por %p141, %p142
    %p144 = scmp.ne.s32.totalorder %s135, %s136
    %p145 = scmp.eq.s32.totalorder %s20, 0
    %p146 = por %p144, %p145
    %p147 = scmp.ne.s32.totalorder %s135, %s136
    %p148 = scmp.eq.s32.totalorder %s21, 1
    %p149 = por %p147, %p148
    %p151 = scmp.ne.s32.totalorder %s136, %s150
    %p152 = scmp.eq.s32.totalorder %s21, 0
    %p153 = por %p151, %p152
    %s155 = sadd.s32 %s154, 1
    %p158 = scmp.eq.s32.totalorder %s15, 1
    %p159 = scmp.ne.s32.totalorder %s154, %s156
    %p160 = scmp.eq.s32.totalorder %s15, 0
    %p161 = por %p159, %p160
    %p162 = scmp.ne.s32.totalorder %s154, %s156
    %p163 = scmp.eq.s32.totalorder %s20, 1
    %p164 = por %p162, %p163
    %p165 = scmp.ne.s32.totalorder %s156, %s157
    %p166 = scmp.eq.s32.totalorder %s20, 0
    %p167 = por %p165, %p166
    %p168 = scmp.ne.s32.totalorder %s156, %s157
    %p169 = scmp.eq.s32.totalorder %s21, 1
    %p170 = por %p168, %p169
    %p172 = scmp.ne.s32.totalorder %s157, %s171
    %p173 = scmp.eq.s32.totalorder %s21, 0
    %p174 = por %p172, %p173
    %s176 = sadd.s32 %s175, 1
    %p179 = scmp.eq.s32.totalorder %s15, 1
    %p180 = scmp.ne.s32.totalorder %s175, %s177
    %p181 = scmp.eq.s32.totalorder %s15, 0
    %p182 = por %p180, %p181
    %p183 = scmp.ne.s32.totalorder %s175, %s177
    %p184 = scmp.eq.s32.totalorder %s20, 1
    %p185 = por %p183, %p184
    %p186 = scmp.ne.s32.totalorder %s177, %s178
    %p187 = scmp.eq.s32.totalorder %s20, 0
    %p188 = por %p186, %p187
    %p189 = scmp.ne.s32.totalorder %s177, %s178
    %p190 = scmp.eq.s32.totalorder %s21, 1
    %p191 = por %p189, %p190
    %p193 = scmp.ne.s32.totalorder %s178, %s192
    %p194 = scmp.eq.s32.totalorder %s21, 0
    %p195 = por %p193, %p194
    %s197 = sadd.s32 %s196, 1
    %p200 = scmp.eq.s32.totalorder %s15, 1
    %p201 = scmp.ne.s32.totalorder %s196, %s198
    %p202 = scmp.eq.s32.totalorder %s15, 0
    %p203 = por %p201, %p202
    %p204 = scmp.ne.s32.totalorder %s196, %s198
    %p205 = scmp.eq.s32.totalorder %s20, 1
    %p206 = por %p204, %p205
    %p207 = scmp.ne.s32.totalorder %s198, %s199
    %p208 = scmp.eq.s32.totalorder %s20, 0
    %p209 = por %p207, %p208
    %p210 = scmp.ne.s32.totalorder %s198, %s199
    %p211 = scmp.eq.s32.totalorder %s21, 1
    %p212 = por %p210, %p211
    %p214 = scmp.ne.s32.totalorder %s199, %s213
    %p215 = scmp.eq.s32.totalorder %s21, 0
    %p216 = por %p214, %p215
    %s217 = ssub.s32 %s15, %s22
    %p218 = scmp.eq.s32.totalorder %s217, 0
    %s220 = sadd.s32 %s219, 1
    %s221 = scalar_select %p218, %s219, %s220
    %p224 = pneg %p218
    %p225 = scmp.eq.s32.totalorder %s15, 1
    %p226 = por %p224, %p225
    %p227 = scmp.ne.s32.totalorder %s219, %s222
    %p228 = scmp.eq.s32.totalorder %s15, 0
    %p229 = por %p227, %p228
    %p230 = scmp.ne.s32.totalorder %s219, %s222
    %p231 = scmp.eq.s32.totalorder %s20, 1
    %p232 = por %p230, %p231
    %p233 = scmp.ne.s32.totalorder %s222, %s223
    %p234 = scmp.eq.s32.totalorder %s20, 0
    %p235 = por %p233, %p234
    %p236 = scmp.ne.s32.totalorder %s222, %s223
    %p237 = scmp.eq.s32.totalorder %s21, 1
    %p238 = por %p236, %p237
    %p240 = scmp.ne.s32.totalorder %s223, %s239
    %p241 = scmp.eq.s32.totalorder %s21, 0
    %p242 = por %p240, %p241
    %p243 = scmp.le.s32.totalorder 1, %s15
    %p244 = scmp.lt.s32.totalorder %s15, 3
    %p245 = pnand %p243, %p244
    %p246 = pneg %p245
    // Predicated region
    $region9: #{unet_up_forward.1} parent=5 // pred_check
      _
    $region10: #{unet_up_forward.1} parent=5 // pred_check_branch
      %248 = sbr.rel (%p245) target = $region12
    $region11: #{unet_up_forward.1} parent=5 // pred_region
      %s249 = ssub.s32 %s15, 1
      // Predicated region
      $region13: #{unet_up_forward.1} parent=11 // pred_check
        %p250 = pneg %p62
      $region14: #{unet_up_forward.1} parent=11 // pred_check_branch
        %252 = sbr.rel (%p250) target = $region16
      $region15: #{unet_up_forward.1} parent=11 // pred_region
        _
      $region16: #{unet_up_forward.1} parent=11 // pred_fallthru
        _
      // Predicated region
      $region17: #{unet_up_forward.1} parent=11 // pred_check
        %p253 = pneg %p83
      $region18: #{unet_up_forward.1} parent=11 // pred_check_branch
        %255 = sbr.rel (%p253) target = $region20
      $region19: #{unet_up_forward.1} parent=11 // pred_region
        _
      $region20: #{unet_up_forward.1} parent=11 // pred_fallthru
        _
      // Predicated region
      $region21: #{unet_up_forward.1} parent=11 // pred_check
        %p256 = pneg %p104
      $region22: #{unet_up_forward.1} parent=11 // pred_check_branch
        %258 = sbr.rel (%p256) target = $region24
      $region23: #{unet_up_forward.1} parent=11 // pred_region
        _
      $region24: #{unet_up_forward.1} parent=11 // pred_fallthru
        _
      // Predicated region
      $region25: #{unet_up_forward.1} parent=11 // pred_check
        %p259 = pneg %p125
      $region26: #{unet_up_forward.1} parent=11 // pred_check_branch
        %261 = sbr.rel (%p259) target = $region28
      $region27: #{unet_up_forward.1} parent=11 // pred_region
        _
      $region28: #{unet_up_forward.1} parent=11 // pred_fallthru
        _
      // Predicated region
      $region29: #{unet_up_forward.1} parent=11 // pred_check
        %p262 = pneg %p146
      $region30: #{unet_up_forward.1} parent=11 // pred_check_branch
        %264 = sbr.rel (%p262) target = $region32
      $region31: #{unet_up_forward.1} parent=11 // pred_region
        _
      $region32: #{unet_up_forward.1} parent=11 // pred_fallthru
        _
      // Predicated region
      $region33: #{unet_up_forward.1} parent=11 // pred_check
        %p265 = pneg %p167
      $region34: #{unet_up_forward.1} parent=11 // pred_check_branch
        %267 = sbr.rel (%p265) target = $region36
      $region35: #{unet_up_forward.1} parent=11 // pred_region
        _
      $region36: #{unet_up_forward.1} parent=11 // pred_fallthru
        _
      // Predicated region
      $region37: #{unet_up_forward.1} parent=11 // pred_check
        %p268 = pneg %p188
      $region38: #{unet_up_forward.1} parent=11 // pred_check_branch
        %270 = sbr.rel (%p268) target = $region40
      $region39: #{unet_up_forward.1} parent=11 // pred_region
        _
      $region40: #{unet_up_forward.1} parent=11 // pred_fallthru
        _
      // Predicated region
      $region41: #{unet_up_forward.1} parent=11 // pred_check
        %p271 = pneg %p209
      $region42: #{unet_up_forward.1} parent=11 // pred_check_branch
        %273 = sbr.rel (%p271) target = $region44
      $region43: #{unet_up_forward.1} parent=11 // pred_region
        _
      $region44: #{unet_up_forward.1} parent=11 // pred_fallthru
        _
    $region12: #{unet_up_forward.1} parent=5 // pred_fallthru
      _
    %p274 = scmp.lt.s32.totalorder %s15, 2
    // Predicated region
    $region45: #{unet_up_forward.1} parent=5 // pred_check
      %p275 = pneg %p274
    $region46: #{unet_up_forward.1} parent=5 // pred_check_branch
      %277 = sbr.rel (%p275) target = $region48
    $region47: #{unet_up_forward.1} parent=5 // pred_region
      // Predicated region
      $region49: #{unet_up_forward.1} parent=47 // pred_check
        %p278 = pneg %p35
      $region50: #{unet_up_forward.1} parent=47 // pred_check_branch
        %280 = sbr.rel (%p278) target = $region52
      $region51: #{unet_up_forward.1} parent=47 // pred_region
        %p281 = scmp.lt.s32.totalorder %s15, 1
        %s282 = scalar_select %p281, %s15, 1
        %s283 = smul.addr %s282, 20
        %s284 = smul.addr %s283, 8
        %s285 = scalar_lea.vmem %s0, %s284
      $region52: #{unet_up_forward.1} parent=47 // pred_fallthru
        _
    $region48: #{unet_up_forward.1} parent=5 // pred_fallthru
      _
    %p286 = scmp.le.s32.totalorder 1, %s15
    %p287 = scmp.lt.s32.totalorder %s15, 3
    %p288 = pnand %p286, %p287
    %p289 = pneg %p288
    // Predicated region
    $region53: #{unet_up_forward.1} parent=5 // pred_check
      _
    $region54: #{unet_up_forward.1} parent=5 // pred_check_branch
      %291 = sbr.rel (%p288) target = $region56
    $region55: #{unet_up_forward.1} parent=5 // pred_region
      %s292 = ssub.s32 %s15, 1
      %p293 = scmp.lt.s32.totalorder %s20, 1
      %s294 = scalar_select %p293, %s20, 1
      %s295 = smul.addr %s294, 20
      %s296 = smul.addr %s295, 8
      %s297 = scalar_lea.vmem %s0, %s296
      %p298 = pneg %p41
      %p299 = pneg %p38
      %p300 = pneg %p62
      %p301 = pneg %p59
      %p302 = pneg %p83
      %p303 = pneg %p80
      %p304 = pneg %p104
      %p305 = pneg %p101
      %p306 = pneg %p125
      %p307 = pneg %p122
      %p308 = pneg %p146
      %p309 = pneg %p143
      %p310 = pneg %p167
      %p311 = pneg %p164
      %p312 = pneg %p188
      %p313 = pneg %p185
      %p314 = pneg %p209
      %p315 = pneg %p206
      %p316 = pneg %p235
      %p317 = pneg %p232
      %p318 = scmp.lt.s32.totalorder %s20, 1
      %s319 = scalar_select %p318, %s20, 1
      %s320 = smul.addr %s319, 3
      %s321 = smul.addr %s320, 4
      %s322 = scalar_lea.vmem %s9, %s321
      %p323 = scmp.lt.s32.totalorder %s20, 1
      %s324 = scalar_select %p323, %s20, 1
      %s325 = smul.addr %s324, 20
      %s326 = smul.addr %s325, 8
      %s327 = scalar_lea.vmem %s0, %s326
      %p328 = scmp.lt.s32.totalorder %s20, 1
      %s329 = scalar_select %p328, %s20, 1
      %s330 = smul.addr %s329, 3
      %s331 = smul.addr %s330, 4
      %s332 = scalar_lea.vmem %s9, %s331
      %v333 = vld [vmem:[%s327] sm:$0xff]
      %v334 = vld [vmem:[%s327 + $0x8] sm:$0xff]
      %v335 = vld [vmem:[%s327 + $0x10] sm:$0xff]
      %v336 = vld [vmem:[%s327 + $0x18] sm:$0xff]
      %v337 = vld [vmem:[%s327 + $0x20] sm:$0xff]
      %v338 = vld [vmem:[%s327 + $0x28] sm:$0xff]
      %v339 = vld [vmem:[%s327 + $0x30] sm:$0xff]
      %v340 = vld [vmem:[%s327 + $0x38] sm:$0xff]
      %v341 = vld [vmem:[%s327 + $0x40] sm:$0xff]
      %v342 = vld [vmem:[%s327 + $0x48] sm:$0xff]
      %v343 = vld [vmem:[%s327 + $0x50] sm:$0xff]
      %v344 = vld [vmem:[%s327 + $0x58] sm:$0xff]
      %v345 = vld [vmem:[%s327 + $0x60] sm:$0xff]
      %v346 = vld [vmem:[%s327 + $0x68] sm:$0xff]
      %v347 = vld [vmem:[%s327 + $0x70] sm:$0xff]
      %v348 = vld [vmem:[%s327 + $0x78] sm:$0xff]
      %v349 = vld [vmem:[%s327 + $0x80] sm:$0xf]
      %v350 = vld [vmem:[%s327 + $0x88] sm:$0xf]
      %v351 = vld [vmem:[%s327 + $0x90] sm:$0xf]
      %v352 = vld [vmem:[%s327 + $0x98] sm:$0xf]
      %v353 = vld [vmem:[%s7] sm:$0xf]
      %v354 = vld [vmem:[%s8] sm:$0xf]
      %v355 = vld [vmem:[%s1] sm:$0xff]
      %v356 = vld [vmem:[%s2] sm:$0xff]
      %358 = vset.pattern.permute.xlu0 0
      %359 = vperm.xlu0 %358, %v356
      %v360 = vpop.permute.xlu0 %359
      %v363 = vperm.slane %v353, 0
      %v364 = vperm.slane %v353, 1
      %v365 = vperm.slane %v353, 2
      %v366 = vperm.slane %v353, 3
      %v371 = vmul.f32 %v360, %v363
      %v372 = vmul.f32 %v360, %v364
      %v373 = vmul.f32 %v360, %v365
      %v374 = vmul.f32 %v360, %v366
      %vm375 = vcmask 293888
      %v377 = vsel %vm375, %v355, 0
      %vm379 = vcmask 1043456
      %v381 = vsel %vm379, %v349, 0
      %v384 = vsel %vm379, %v350, 0
      %v387 = vsel %vm379, %v351, 0
      %v390 = vsel %vm379, %v352, 0
      %392 = vmatpush.msra.mxu0 0.0
      %393 = vmatpush.msra.mxu0 0.0
      %394 = vmatpush.msra.mxu0 0.0
      %395 = vmatpush.msra.mxu0 0.0
      %396 = vmatpush.msra.mxu0 0.0
      %397 = vmatpush.msra.mxu0 0.0
      %398 = vmatpush.msra.mxu0 0.0
      %399 = vmatpush.msra.mxu0 0.0
      %400 = vmatpush.msra.mxu0 0.0
      %401 = vmatpush.msra.mxu0 0.0
      %402 = vmatpush.msra.mxu0 0.0
      %403 = vmatpush.msra.mxu0 %v381
      %404 = vmatpush.msra.mxu0 %v345
      %405 = vmatpush.msra.mxu0 %v341
      %406 = vmatpush.msra.mxu0 %v337
      %407 = vmatpush.msra.mxu0 %v333
      %408 = vmatmul.f32.gmra.mxu0 %v377
      %v409 = vpop.f32.mrf.mxu0
      %v410 = vadd.f32 %v371, %v409
      %411 = vdwg.mxu0
      %412 = vmatpush.msra.mxu0 0.0
      %413 = vmatpush.msra.mxu0 0.0
      %414 = vmatpush.msra.mxu0 0.0
      %415 = vmatpush.msra.mxu0 0.0
      %416 = vmatpush.msra.mxu0 0.0
      %417 = vmatpush.msra.mxu0 0.0
      %418 = vmatpush.msra.mxu0 0.0
      %419 = vmatpush.msra.mxu0 0.0
      %420 = vmatpush.msra.mxu0 0.0
      %421 = vmatpush.msra.mxu0 0.0
      %422 = vmatpush.msra.mxu0 0.0
      %423 = vmatpush.msra.mxu0 %v384
      %424 = vmatpush.msra.mxu0 %v346
      %425 = vmatpush.msra.mxu0 %v342
      %426 = vmatpush.msra.mxu0 %v338
      %427 = vmatpush.msra.mxu0 %v334
      %428 = vmatmul.f32.gmra.mxu0 %v377
      %v429 = vpop.f32.mrf.mxu0
      %v430 = vadd.f32 %v372, %v429
      %431 = vdwg.mxu0
      %432 = vmatpush.msra.mxu0 0.0
      %433 = vmatpush.msra.mxu0 0.0
      %434 = vmatpush.msra.mxu0 0.0
      %435 = vmatpush.msra.mxu0 0.0
      %436 = vmatpush.msra.mxu0 0.0
      %437 = vmatpush.msra.mxu0 0.0
      %438 = vmatpush.msra.mxu0 0.0
      %439 = vmatpush.msra.mxu0 0.0
      %440 = vmatpush.msra.mxu0 0.0
      %441 = vmatpush.msra.mxu0 0.0
      %442 = vmatpush.msra.mxu0 0.0
      %443 = vmatpush.msra.mxu0 %v387
      %444 = vmatpush.msra.mxu0 %v347
      %445 = vmatpush.msra.mxu0 %v343
      %446 = vmatpush.msra.mxu0 %v339
      %447 = vmatpush.msra.mxu0 %v335
      %448 = vmatmul.f32.gmra.mxu0 %v377
      %v449 = vpop.f32.mrf.mxu0
      %v450 = vadd.f32 %v373, %v449
      %451 = vdwg.mxu0
      %452 = vmatpush.msra.mxu0 0.0
      %453 = vmatpush.msra.mxu0 0.0
      %454 = vmatpush.msra.mxu0 0.0
      %455 = vmatpush.msra.mxu0 0.0
      %456 = vmatpush.msra.mxu0 0.0
      %457 = vmatpush.msra.mxu0 0.0
      %458 = vmatpush.msra.mxu0 0.0
      %459 = vmatpush.msra.mxu0 0.0
      %460 = vmatpush.msra.mxu0 0.0
      %461 = vmatpush.msra.mxu0 0.0
      %462 = vmatpush.msra.mxu0 0.0
      %463 = vmatpush.msra.mxu0 %v390
      %464 = vmatpush.msra.mxu0 %v348
      %465 = vmatpush.msra.mxu0 %v344
      %466 = vmatpush.msra.mxu0 %v340
      %467 = vmatpush.msra.mxu0 %v336
      %468 = vmatmul.f32.gmra.mxu0 %v377
      %v469 = vpop.f32.mrf.mxu0
      %v470 = vadd.f32 %v374, %v469
      %471 = vdwg.mxu0
      %v472 = vld [vmem:[%s3] sm:$0xff]
      %v473 = vld [vmem:[%s3 + $0x8] sm:$0xff]
      %v474 = vld [vmem:[%s3 + $0x10] sm:$0xff]
      %v475 = vld [vmem:[%s3 + $0x18] sm:$0xff]
      %v476 = vld [vmem:[%s3 + $0x20] sm:$0xf]
      %v477 = vld [vmem:[%s5] sm:$0xff]
      %v478 = vld [vmem:[%s5 + $0x8] sm:$0xff]
      %v479 = vld [vmem:[%s5 + $0x10] sm:$0xff]
      %v480 = vld [vmem:[%s5 + $0x18] sm:$0xff]
      %v481 = vld [vmem:[%s5 + $0x20] sm:$0xf]
      %v482 = vld [vmem:[%s4] sm:$0xf]
      %484 = vset.pattern.permute.xlu0 0
      %485 = vperm.xlu0 %484, %v482
      %v486 = vpop.permute.xlu0 %485
      %v488 = vadd.f32 %v486, 0.0
      %vm489 = vcmask 64512
      %v491 = vsel %vm489, %v472, 0
      %493 = vmatpush.msra.mxu0 0.0
      %494 = vmatpush.msra.mxu0 0.0
      %495 = vmatpush.msra.mxu0 0.0
      %496 = vmatpush.msra.mxu0 0.0
      %497 = vmatpush.msra.mxu0 0.0
      %498 = vmatpush.msra.mxu0 0.0
      %499 = vmatpush.msra.mxu0 0.0
      %500 = vmatpush.msra.mxu0 0.0
      %501 = vmatpush.msra.mxu0 0.0
      %502 = vmatpush.msra.mxu0 0.0
      %503 = vmatpush.msra.mxu0 0.0
      %504 = vmatpush.msra.mxu0 0.0
      %505 = vmatpush.msra.mxu0 0.0
      %506 = vmatpush.msra.mxu0 0.0
      %507 = vmatpush.msra.mxu0 0.0
      %508 = vmatpush.msra.mxu0 %v410
      %509 = vmatmul.f32.gmra.mxu0 %v491
      %v510 = vpop.f32.mrf.mxu0
      %v511 = vadd.f32 0.0, %v510
      %512 = vdwg.mxu0
      %513 = vmatpush.msra.mxu0 0.0
      %514 = vmatpush.msra.mxu0 0.0
      %515 = vmatpush.msra.mxu0 0.0
      %516 = vmatpush.msra.mxu0 0.0
      %517 = vmatpush.msra.mxu0 0.0
      %518 = vmatpush.msra.mxu0 0.0
      %519 = vmatpush.msra.mxu0 0.0
      %520 = vmatpush.msra.mxu0 0.0
      %521 = vmatpush.msra.mxu0 0.0
      %522 = vmatpush.msra.mxu0 0.0
      %523 = vmatpush.msra.mxu0 0.0
      %524 = vmatpush.msra.mxu0 0.0
      %525 = vmatpush.msra.mxu0 0.0
      %526 = vmatpush.msra.mxu0 0.0
      %527 = vmatpush.msra.mxu0 0.0
      %528 = vmatpush.msra.mxu0 %v430
      %529 = vmatmul.f32.gmra.mxu0 %v491
      %v530 = vpop.f32.mrf.mxu0
      %v531 = vadd.f32 0.0, %v530
      %532 = vdwg.mxu0
      %533 = vmatpush.msra.mxu0 0.0
      %534 = vmatpush.msra.mxu0 0.0
      %535 = vmatpush.msra.mxu0 0.0
      %536 = vmatpush.msra.mxu0 0.0
      %537 = vmatpush.msra.mxu0 0.0
      %538 = vmatpush.msra.mxu0 0.0
      %539 = vmatpush.msra.mxu0 0.0
      %540 = vmatpush.msra.mxu0 0.0
      %541 = vmatpush.msra.mxu0 0.0
      %542 = vmatpush.msra.mxu0 0.0
      %543 = vmatpush.msra.mxu0 0.0
      %544 = vmatpush.msra.mxu0 0.0
      %545 = vmatpush.msra.mxu0 0.0
      %546 = vmatpush.msra.mxu0 0.0
      %547 = vmatpush.msra.mxu0 0.0
      %548 = vmatpush.msra.mxu0 %v450
      %549 = vmatmul.f32.gmra.mxu0 %v491
      %v550 = vpop.f32.mrf.mxu0
      %v551 = vadd.f32 0.0, %v550
      %552 = vdwg.mxu0
      %553 = vmatpush.msra.mxu0 0.0
      %554 = vmatpush.msra.mxu0 0.0
      %555 = vmatpush.msra.mxu0 0.0
      %556 = vmatpush.msra.mxu0 0.0
      %557 = vmatpush.msra.mxu0 0.0
      %558 = vmatpush.msra.mxu0 0.0
      %559 = vmatpush.msra.mxu0 0.0
      %560 = vmatpush.msra.mxu0 0.0
      %561 = vmatpush.msra.mxu0 0.0
      %562 = vmatpush.msra.mxu0 0.0
      %563 = vmatpush.msra.mxu0 0.0
      %564 = vmatpush.msra.mxu0 0.0
      %565 = vmatpush.msra.mxu0 0.0
      %566 = vmatpush.msra.mxu0 0.0
      %567 = vmatpush.msra.mxu0 0.0
      %568 = vmatpush.msra.mxu0 %v470
      %569 = vmatmul.f32.gmra.mxu0 %v491
      %v570 = vpop.f32.mrf.mxu0
      %v571 = vadd.f32 0.0, %v570
      %572 = vdwg.mxu0
      %v573 = vadd.f32 %v488, %v511
      %v574 = vadd.f32 %v488, %v531
      %v575 = vadd.f32 %v488, %v551
      %v576 = vadd.f32 %v488, %v571
      %v577 = vrot.slane %v472, 4
      %582 = vrot.lane.b32.xlu0 %v410, 127
      %v583 = vpop.permute.xlu0 %582
      %584 = vrot.lane.b32.xlu0 %v430, 127
      %v585 = vpop.permute.xlu0 %584
      %586 = vrot.lane.b32.xlu0 %v450, 127
      %v587 = vpop.permute.xlu0 %586
      %588 = vrot.lane.b32.xlu0 %v470, 127
      %v589 = vpop.permute.xlu0 %588
      %vm590 = vcmask 1039360
      %v591 = vsel %vm590, %v583, %v585
      %v592 = vsel %vm590, %v585, %v587
      %v593 = vsel %vm590, %v587, %v589
      %v598 = vsel %vm489, %v577, 0
      %600 = vmatpush.msra.mxu0 0.0
      %601 = vmatpush.msra.mxu0 0.0
      %602 = vmatpush.msra.mxu0 0.0
      %603 = vmatpush.msra.mxu0 0.0
      %604 = vmatpush.msra.mxu0 0.0
      %605 = vmatpush.msra.mxu0 0.0
      %606 = vmatpush.msra.mxu0 0.0
      %607 = vmatpush.msra.mxu0 0.0
      %608 = vmatpush.msra.mxu0 0.0
      %609 = vmatpush.msra.mxu0 0.0
      %610 = vmatpush.msra.mxu0 0.0
      %611 = vmatpush.msra.mxu0 0.0
      %612 = vmatpush.msra.mxu0 0.0
      %613 = vmatpush.msra.mxu0 0.0
      %614 = vmatpush.msra.mxu0 0.0
      %615 = vmatpush.msra.mxu0 %v591
      %616 = vmatmul.f32.gmra.mxu0 %v598
      %v617 = vpop.f32.mrf.mxu0
      %v618 = vadd.f32 0.0, %v617
      %619 = vdwg.mxu0
      %620 = vmatpush.msra.mxu0 0.0
      %621 = vmatpush.msra.mxu0 0.0
      %622 = vmatpush.msra.mxu0 0.0
      %623 = vmatpush.msra.mxu0 0.0
      %624 = vmatpush.msra.mxu0 0.0
      %625 = vmatpush.msra.mxu0 0.0
      %626 = vmatpush.msra.mxu0 0.0
      %627 = vmatpush.msra.mxu0 0.0
      %628 = vmatpush.msra.mxu0 0.0
      %629 = vmatpush.msra.mxu0 0.0
      %630 = vmatpush.msra.mxu0 0.0
      %631 = vmatpush.msra.mxu0 0.0
      %632 = vmatpush.msra.mxu0 0.0
      %633 = vmatpush.msra.mxu0 0.0
      %634 = vmatpush.msra.mxu0 0.0
      %635 = vmatpush.msra.mxu0 %v592
      %636 = vmatmul.f32.gmra.mxu0 %v598
      %v637 = vpop.f32.mrf.mxu0
      %v638 = vadd.f32 0.0, %v637
      %639 = vdwg.mxu0
      %640 = vmatpush.msra.mxu0 0.0
      %641 = vmatpush.msra.mxu0 0.0
      %642 = vmatpush.msra.mxu0 0.0
      %643 = vmatpush.msra.mxu0 0.0
      %644 = vmatpush.msra.mxu0 0.0
      %645 = vmatpush.msra.mxu0 0.0
      %646 = vmatpush.msra.mxu0 0.0
      %647 = vmatpush.msra.mxu0 0.0
      %648 = vmatpush.msra.mxu0 0.0
      %649 = vmatpush.msra.mxu0 0.0
      %650 = vmatpush.msra.mxu0 0.0
      %651 = vmatpush.msra.mxu0 0.0
      %652 = vmatpush.msra.mxu0 0.0
      %653 = vmatpush.msra.mxu0 0.0
      %654 = vmatpush.msra.mxu0 0.0
      %655 = vmatpush.msra.mxu0 %v593
      %656 = vmatmul.f32.gmra.mxu0 %v598
      %v657 = vpop.f32.mrf.mxu0
      %v658 = vadd.f32 0.0, %v657
      %659 = vdwg.mxu0
      %660 = vmatpush.msra.mxu0 0.0
      %661 = vmatpush.msra.mxu0 0.0
      %662 = vmatpush.msra.mxu0 0.0
      %663 = vmatpush.msra.mxu0 0.0
      %664 = vmatpush.msra.mxu0 0.0
      %665 = vmatpush.msra.mxu0 0.0
      %666 = vmatpush.msra.mxu0 0.0
      %667 = vmatpush.msra.mxu0 0.0
      %668 = vmatpush.msra.mxu0 0.0
      %669 = vmatpush.msra.mxu0 0.0
      %670 = vmatpush.msra.mxu0 0.0
      %671 = vmatpush.msra.mxu0 0.0
      %672 = vmatpush.msra.mxu0 0.0
      %673 = vmatpush.msra.mxu0 0.0
      %674 = vmatpush.msra.mxu0 0.0
      %675 = vmatpush.msra.mxu0 %v589
      %676 = vmatmul.f32.gmra.mxu0 %v598
      %v677 = vpop.f32.mrf.mxu0
      %v678 = vadd.f32 0.0, %v677
      %679 = vdwg.mxu0
      %v680 = vadd.f32 %v573, %v618
      %v681 = vadd.f32 %v574, %v638
      %v682 = vadd.f32 %v575, %v658
      %v683 = vadd.f32 %v576, %v678
      %684 = vrot.lane.b32.xlu0 %v410, 126
      %v685 = vpop.permute.xlu0 %684
      %686 = vrot.lane.b32.xlu0 %v430, 126
      %v687 = vpop.permute.xlu0 %686
      %688 = vrot.lane.b32.xlu0 %v450, 126
      %v689 = vpop.permute.xlu0 %688
      %690 = vrot.lane.b32.xlu0 %v470, 126
      %v691 = vpop.permute.xlu0 %690
      %vm692 = vcmask 1031168
      %v693 = vsel %vm692, %v685, %v687
      %v694 = vsel %vm692, %v687, %v689
      %v695 = vsel %vm692, %v689, %v691
      %v701 = vsel %vm489, %v473, 0
      %703 = vmatpush.msra.mxu0 0.0
      %704 = vmatpush.msra.mxu0 0.0
      %705 = vmatpush.msra.mxu0 0.0
      %706 = vmatpush.msra.mxu0 0.0
      %707 = vmatpush.msra.mxu0 0.0
      %708 = vmatpush.msra.mxu0 0.0
      %709 = vmatpush.msra.mxu0 0.0
      %710 = vmatpush.msra.mxu0 0.0
      %711 = vmatpush.msra.mxu0 0.0
      %712 = vmatpush.msra.mxu0 0.0
      %713 = vmatpush.msra.mxu0 0.0
      %714 = vmatpush.msra.mxu0 0.0
      %715 = vmatpush.msra.mxu0 0.0
      %716 = vmatpush.msra.mxu0 0.0
      %717 = vmatpush.msra.mxu0 0.0
      %718 = vmatpush.msra.mxu0 %v693
      %719 = vmatmul.f32.gmra.mxu0 %v701
      %v720 = vpop.f32.mrf.mxu0
      %v721 = vadd.f32 0.0, %v720
      %722 = vdwg.mxu0
      %723 = vmatpush.msra.mxu0 0.0
      %724 = vmatpush.msra.mxu0 0.0
      %725 = vmatpush.msra.mxu0 0.0
      %726 = vmatpush.msra.mxu0 0.0
      %727 = vmatpush.msra.mxu0 0.0
      %728 = vmatpush.msra.mxu0 0.0
      %729 = vmatpush.msra.mxu0 0.0
      %730 = vmatpush.msra.mxu0 0.0
      %731 = vmatpush.msra.mxu0 0.0
      %732 = vmatpush.msra.mxu0 0.0
      %733 = vmatpush.msra.mxu0 0.0
      %734 = vmatpush.msra.mxu0 0.0
      %735 = vmatpush.msra.mxu0 0.0
      %736 = vmatpush.msra.mxu0 0.0
      %737 = vmatpush.msra.mxu0 0.0
      %738 = vmatpush.msra.mxu0 %v694
      %739 = vmatmul.f32.gmra.mxu0 %v701
      %v740 = vpop.f32.mrf.mxu0
      %v741 = vadd.f32 0.0, %v740
      %742 = vdwg.mxu0
      %743 = vmatpush.msra.mxu0 0.0
      %744 = vmatpush.msra.mxu0 0.0
      %745 = vmatpush.msra.mxu0 0.0
      %746 = vmatpush.msra.mxu0 0.0
      %747 = vmatpush.msra.mxu0 0.0
      %748 = vmatpush.msra.mxu0 0.0
      %749 = vmatpush.msra.mxu0 0.0
      %750 = vmatpush.msra.mxu0 0.0
      %751 = vmatpush.msra.mxu0 0.0
      %752 = vmatpush.msra.mxu0 0.0
      %753 = vmatpush.msra.mxu0 0.0
      %754 = vmatpush.msra.mxu0 0.0
      %755 = vmatpush.msra.mxu0 0.0
      %756 = vmatpush.msra.mxu0 0.0
      %757 = vmatpush.msra.mxu0 0.0
      %758 = vmatpush.msra.mxu0 %v695
      %759 = vmatmul.f32.gmra.mxu0 %v701
      %v760 = vpop.f32.mrf.mxu0
      %v761 = vadd.f32 0.0, %v760
      %762 = vdwg.mxu0
      %763 = vmatpush.msra.mxu0 0.0
      %764 = vmatpush.msra.mxu0 0.0
      %765 = vmatpush.msra.mxu0 0.0
      %766 = vmatpush.msra.mxu0 0.0
      %767 = vmatpush.msra.mxu0 0.0
      %768 = vmatpush.msra.mxu0 0.0
      %769 = vmatpush.msra.mxu0 0.0
      %770 = vmatpush.msra.mxu0 0.0
      %771 = vmatpush.msra.mxu0 0.0
      %772 = vmatpush.msra.mxu0 0.0
      %773 = vmatpush.msra.mxu0 0.0
      %774 = vmatpush.msra.mxu0 0.0
      %775 = vmatpush.msra.mxu0 0.0
      %776 = vmatpush.msra.mxu0 0.0
      %777 = vmatpush.msra.mxu0 0.0
      %778 = vmatpush.msra.mxu0 %v691
      %779 = vmatmul.f32.gmra.mxu0 %v701
      %v780 = vpop.f32.mrf.mxu0
      %v781 = vadd.f32 0.0, %v780
      %782 = vdwg.mxu0
      %v783 = vadd.f32 %v680, %v721
      %v784 = vadd.f32 %v681, %v741
      %v785 = vadd.f32 %v682, %v761
      %v786 = vadd.f32 %v683, %v781
      %v787 = vrot.slane %v473, 4
      %788 = vrot.lane.b32.xlu0 %v410, 110
      %v789 = vpop.permute.xlu0 %788
      %790 = vrot.lane.b32.xlu0 %v430, 110
      %v791 = vpop.permute.xlu0 %790
      %792 = vrot.lane.b32.xlu0 %v450, 110
      %v793 = vpop.permute.xlu0 %792
      %794 = vrot.lane.b32.xlu0 %v470, 110
      %v795 = vpop.permute.xlu0 %794
      %vm796 = vcmask 900096
      %v797 = vsel %vm796, %v789, %v791
      %v798 = vsel %vm796, %v791, %v793
      %v799 = vsel %vm796, %v793, %v795
      %v804 = vsel %vm489, %v787, 0
      %806 = vmatpush.msra.mxu0 0.0
      %807 = vmatpush.msra.mxu0 0.0
      %808 = vmatpush.msra.mxu0 0.0
      %809 = vmatpush.msra.mxu0 0.0
      %810 = vmatpush.msra.mxu0 0.0
      %811 = vmatpush.msra.mxu0 0.0
      %812 = vmatpush.msra.mxu0 0.0
      %813 = vmatpush.msra.mxu0 0.0
      %814 = vmatpush.msra.mxu0 0.0
      %815 = vmatpush.msra.mxu0 0.0
      %816 = vmatpush.msra.mxu0 0.0
      %817 = vmatpush.msra.mxu0 0.0
      %818 = vmatpush.msra.mxu0 0.0
      %819 = vmatpush.msra.mxu0 0.0
      %820 = vmatpush.msra.mxu0 0.0
      %821 = vmatpush.msra.mxu0 %v797
      %822 = vmatmul.f32.gmra.mxu0 %v804
      %v823 = vpop.f32.mrf.mxu0
      %v824 = vadd.f32 0.0, %v823
      %825 = vdwg.mxu0
      %826 = vmatpush.msra.mxu0 0.0
      %827 = vmatpush.msra.mxu0 0.0
      %828 = vmatpush.msra.mxu0 0.0
      %829 = vmatpush.msra.mxu0 0.0
      %830 = vmatpush.msra.mxu0 0.0
      %831 = vmatpush.msra.mxu0 0.0
      %832 = vmatpush.msra.mxu0 0.0
      %833 = vmatpush.msra.mxu0 0.0
      %834 = vmatpush.msra.mxu0 0.0
      %835 = vmatpush.msra.mxu0 0.0
      %836 = vmatpush.msra.mxu0 0.0
      %837 = vmatpush.msra.mxu0 0.0
      %838 = vmatpush.msra.mxu0 0.0
      %839 = vmatpush.msra.mxu0 0.0
      %840 = vmatpush.msra.mxu0 0.0
      %841 = vmatpush.msra.mxu0 %v798
      %842 = vmatmul.f32.gmra.mxu0 %v804
      %v843 = vpop.f32.mrf.mxu0
      %v844 = vadd.f32 0.0, %v843
      %845 = vdwg.mxu0
      %846 = vmatpush.msra.mxu0 0.0
      %847 = vmatpush.msra.mxu0 0.0
      %848 = vmatpush.msra.mxu0 0.0
      %849 = vmatpush.msra.mxu0 0.0
      %850 = vmatpush.msra.mxu0 0.0
      %851 = vmatpush.msra.mxu0 0.0
      %852 = vmatpush.msra.mxu0 0.0
      %853 = vmatpush.msra.mxu0 0.0
      %854 = vmatpush.msra.mxu0 0.0
      %855 = vmatpush.msra.mxu0 0.0
      %856 = vmatpush.msra.mxu0 0.0
      %857 = vmatpush.msra.mxu0 0.0
      %858 = vmatpush.msra.mxu0 0.0
      %859 = vmatpush.msra.mxu0 0.0
      %860 = vmatpush.msra.mxu0 0.0
      %861 = vmatpush.msra.mxu0 %v799
      %862 = vmatmul.f32.gmra.mxu0 %v804
      %v863 = vpop.f32.mrf.mxu0
      %v864 = vadd.f32 0.0, %v863
      %865 = vdwg.mxu0
      %866 = vmatpush.msra.mxu0 0.0
      %867 = vmatpush.msra.mxu0 0.0
      %868 = vmatpush.msra.mxu0 0.0
      %869 = vmatpush.msra.mxu0 0.0
      %870 = vmatpush.msra.mxu0 0.0
      %871 = vmatpush.msra.mxu0 0.0
      %872 = vmatpush.msra.mxu0 0.0
      %873 = vmatpush.msra.mxu0 0.0
      %874 = vmatpush.msra.mxu0 0.0
      %875 = vmatpush.msra.mxu0 0.0
      %876 = vmatpush.msra.mxu0 0.0
      %877 = vmatpush.msra.mxu0 0.0
      %878 = vmatpush.msra.mxu0 0.0
      %879 = vmatpush.msra.mxu0 0.0
      %880 = vmatpush.msra.mxu0 0.0
      %881 = vmatpush.msra.mxu0 %v795
      %882 = vmatmul.f32.gmra.mxu0 %v804
      %v883 = vpop.f32.mrf.mxu0
      %v884 = vadd.f32 0.0, %v883
      %885 = vdwg.mxu0
      %v886 = vadd.f32 %v783, %v824
      %v887 = vadd.f32 %v784, %v844
      %v888 = vadd.f32 %v785, %v864
      %v889 = vadd.f32 %v786, %v884
      %890 = vrot.lane.b32.xlu0 %v410, 109
      %v891 = vpop.permute.xlu0 %890
      %892 = vrot.lane.b32.xlu0 %v430, 109
      %v893 = vpop.permute.xlu0 %892
      %894 = vrot.lane.b32.xlu0 %v450, 109
      %v895 = vpop.permute.xlu0 %894
      %896 = vrot.lane.b32.xlu0 %v470, 109
      %v897 = vpop.permute.xlu0 %896
      %vm898 = vcmask 891904
      %v899 = vsel %vm898, %v891, %v893
      %v900 = vsel %vm898, %v893, %v895
      %v901 = vsel %vm898, %v895, %v897
      %v907 = vsel %vm489, %v474, 0
      %909 = vmatpush.msra.mxu0 0.0
      %910 = vmatpush.msra.mxu0 0.0
      %911 = vmatpush.msra.mxu0 0.0
      %912 = vmatpush.msra.mxu0 0.0
      %913 = vmatpush.msra.mxu0 0.0
      %914 = vmatpush.msra.mxu0 0.0
      %915 = vmatpush.msra.mxu0 0.0
      %916 = vmatpush.msra.mxu0 0.0
      %917 = vmatpush.msra.mxu0 0.0
      %918 = vmatpush.msra.mxu0 0.0
      %919 = vmatpush.msra.mxu0 0.0
      %920 = vmatpush.msra.mxu0 0.0
      %921 = vmatpush.msra.mxu0 0.0
      %922 = vmatpush.msra.mxu0 0.0
      %923 = vmatpush.msra.mxu0 0.0
      %924 = vmatpush.msra.mxu0 %v899
      %925 = vmatmul.f32.gmra.mxu0 %v907
      %v926 = vpop.f32.mrf.mxu0
      %v927 = vadd.f32 0.0, %v926
      %928 = vdwg.mxu0
      %929 = vmatpush.msra.mxu0 0.0
      %930 = vmatpush.msra.mxu0 0.0
      %931 = vmatpush.msra.mxu0 0.0
      %932 = vmatpush.msra.mxu0 0.0
      %933 = vmatpush.msra.mxu0 0.0
      %934 = vmatpush.msra.mxu0 0.0
      %935 = vmatpush.msra.mxu0 0.0
      %936 = vmatpush.msra.mxu0 0.0
      %937 = vmatpush.msra.mxu0 0.0
      %938 = vmatpush.msra.mxu0 0.0
      %939 = vmatpush.msra.mxu0 0.0
      %940 = vmatpush.msra.mxu0 0.0
      %941 = vmatpush.msra.mxu0 0.0
      %942 = vmatpush.msra.mxu0 0.0
      %943 = vmatpush.msra.mxu0 0.0
      %944 = vmatpush.msra.mxu0 %v900
      %945 = vmatmul.f32.gmra.mxu0 %v907
      %v946 = vpop.f32.mrf.mxu0
      %v947 = vadd.f32 0.0, %v946
      %948 = vdwg.mxu0
      %949 = vmatpush.msra.mxu0 0.0
      %950 = vmatpush.msra.mxu0 0.0
      %951 = vmatpush.msra.mxu0 0.0
      %952 = vmatpush.msra.mxu0 0.0
      %953 = vmatpush.msra.mxu0 0.0
      %954 = vmatpush.msra.mxu0 0.0
      %955 = vmatpush.msra.mxu0 0.0
      %956 = vmatpush.msra.mxu0 0.0
      %957 = vmatpush.msra.mxu0 0.0
      %958 = vmatpush.msra.mxu0 0.0
      %959 = vmatpush.msra.mxu0 0.0
      %960 = vmatpush.msra.mxu0 0.0
      %961 = vmatpush.msra.mxu0 0.0
      %962 = vmatpush.msra.mxu0 0.0
      %963 = vmatpush.msra.mxu0 0.0
      %964 = vmatpush.msra.mxu0 %v901
      %965 = vmatmul.f32.gmra.mxu0 %v907
      %v966 = vpop.f32.mrf.mxu0
      %v967 = vadd.f32 0.0, %v966
      %968 = vdwg.mxu0
      %969 = vmatpush.msra.mxu0 0.0
      %970 = vmatpush.msra.mxu0 0.0
      %971 = vmatpush.msra.mxu0 0.0
      %972 = vmatpush.msra.mxu0 0.0
      %973 = vmatpush.msra.mxu0 0.0
      %974 = vmatpush.msra.mxu0 0.0
      %975 = vmatpush.msra.mxu0 0.0
      %976 = vmatpush.msra.mxu0 0.0
      %977 = vmatpush.msra.mxu0 0.0
      %978 = vmatpush.msra.mxu0 0.0
      %979 = vmatpush.msra.mxu0 0.0
      %980 = vmatpush.msra.mxu0 0.0
      %981 = vmatpush.msra.mxu0 0.0
      %982 = vmatpush.msra.mxu0 0.0
      %983 = vmatpush.msra.mxu0 0.0
      %984 = vmatpush.msra.mxu0 %v897
      %985 = vmatmul.f32.gmra.mxu0 %v907
      %v986 = vpop.f32.mrf.mxu0
      %v987 = vadd.f32 0.0, %v986
      %988 = vdwg.mxu0
      %v989 = vadd.f32 %v886, %v927
      %v990 = vadd.f32 %v887, %v947
      %v991 = vadd.f32 %v888, %v967
      %v992 = vadd.f32 %v889, %v987
      %v993 = vrot.slane %v474, 4
      %994 = vrot.lane.b32.xlu0 %v410, 108
      %v995 = vpop.permute.xlu0 %994
      %996 = vrot.lane.b32.xlu0 %v430, 108
      %v997 = vpop.permute.xlu0 %996
      %998 = vrot.lane.b32.xlu0 %v450, 108
      %v999 = vpop.permute.xlu0 %998
      %1000 = vrot.lane.b32.xlu0 %v470, 108
      %v1001 = vpop.permute.xlu0 %1000
      %vm1002 = vcmask 883712
      %v1003 = vsel %vm1002, %v995, %v997
      %v1004 = vsel %vm1002, %v997, %v999
      %v1005 = vsel %vm1002, %v999, %v1001
      %v1010 = vsel %vm489, %v993, 0
      %1012 = vmatpush.msra.mxu0 0.0
      %1013 = vmatpush.msra.mxu0 0.0
      %1014 = vmatpush.msra.mxu0 0.0
      %1015 = vmatpush.msra.mxu0 0.0
      %1016 = vmatpush.msra.mxu0 0.0
      %1017 = vmatpush.msra.mxu0 0.0
      %1018 = vmatpush.msra.mxu0 0.0
      %1019 = vmatpush.msra.mxu0 0.0
      %1020 = vmatpush.msra.mxu0 0.0
      %1021 = vmatpush.msra.mxu0 0.0
      %1022 = vmatpush.msra.mxu0 0.0
      %1023 = vmatpush.msra.mxu0 0.0
      %1024 = vmatpush.msra.mxu0 0.0
      %1025 = vmatpush.msra.mxu0 0.0
      %1026 = vmatpush.msra.mxu0 0.0
      %1027 = vmatpush.msra.mxu0 %v1003
      %1028 = vmatmul.f32.gmra.mxu0 %v1010
      %v1029 = vpop.f32.mrf.mxu0
      %v1030 = vadd.f32 0.0, %v1029
      %1031 = vdwg.mxu0
      %1032 = vmatpush.msra.mxu0 0.0
      %1033 = vmatpush.msra.mxu0 0.0
      %1034 = vmatpush.msra.mxu0 0.0
      %1035 = vmatpush.msra.mxu0 0.0
      %1036 = vmatpush.msra.mxu0 0.0
      %1037 = vmatpush.msra.mxu0 0.0
      %1038 = vmatpush.msra.mxu0 0.0
      %1039 = vmatpush.msra.mxu0 0.0
      %1040 = vmatpush.msra.mxu0 0.0
      %1041 = vmatpush.msra.mxu0 0.0
      %1042 = vmatpush.msra.mxu0 0.0
      %1043 = vmatpush.msra.mxu0 0.0
      %1044 = vmatpush.msra.mxu0 0.0
      %1045 = vmatpush.msra.mxu0 0.0
      %1046 = vmatpush.msra.mxu0 0.0
      %1047 = vmatpush.msra.mxu0 %v1004
      %1048 = vmatmul.f32.gmra.mxu0 %v1010
      %v1049 = vpop.f32.mrf.mxu0
      %v1050 = vadd.f32 0.0, %v1049
      %1051 = vdwg.mxu0
      %1052 = vmatpush.msra.mxu0 0.0
      %1053 = vmatpush.msra.mxu0 0.0
      %1054 = vmatpush.msra.mxu0 0.0
      %1055 = vmatpush.msra.mxu0 0.0
      %1056 = vmatpush.msra.mxu0 0.0
      %1057 = vmatpush.msra.mxu0 0.0
      %1058 = vmatpush.msra.mxu0 0.0
      %1059 = vmatpush.msra.mxu0 0.0
      %1060 = vmatpush.msra.mxu0 0.0
      %1061 = vmatpush.msra.mxu0 0.0
      %1062 = vmatpush.msra.mxu0 0.0
      %1063 = vmatpush.msra.mxu0 0.0
      %1064 = vmatpush.msra.mxu0 0.0
      %1065 = vmatpush.msra.mxu0 0.0
      %1066 = vmatpush.msra.mxu0 0.0
      %1067 = vmatpush.msra.mxu0 %v1005
      %1068 = vmatmul.f32.gmra.mxu0 %v1010
      %v1069 = vpop.f32.mrf.mxu0
      %v1070 = vadd.f32 0.0, %v1069
      %1071 = vdwg.mxu0
      %1072 = vmatpush.msra.mxu0 0.0
      %1073 = vmatpush.msra.mxu0 0.0
      %1074 = vmatpush.msra.mxu0 0.0
      %1075 = vmatpush.msra.mxu0 0.0
      %1076 = vmatpush.msra.mxu0 0.0
      %1077 = vmatpush.msra.mxu0 0.0
      %1078 = vmatpush.msra.mxu0 0.0
      %1079 = vmatpush.msra.mxu0 0.0
      %1080 = vmatpush.msra.mxu0 0.0
      %1081 = vmatpush.msra.mxu0 0.0
      %1082 = vmatpush.msra.mxu0 0.0
      %1083 = vmatpush.msra.mxu0 0.0
      %1084 = vmatpush.msra.mxu0 0.0
      %1085 = vmatpush.msra.mxu0 0.0
      %1086 = vmatpush.msra.mxu0 0.0
      %1087 = vmatpush.msra.mxu0 %v1001
      %1088 = vmatmul.f32.gmra.mxu0 %v1010
      %v1089 = vpop.f32.mrf.mxu0
      %v1090 = vadd.f32 0.0, %v1089
      %1091 = vdwg.mxu0
      %v1092 = vadd.f32 %v989, %v1030
      %v1093 = vadd.f32 %v990, %v1050
      %v1094 = vadd.f32 %v991, %v1070
      %v1095 = vadd.f32 %v992, %v1090
      %1096 = vrot.lane.b32.xlu0 %v410, 92
      %v1097 = vpop.permute.xlu0 %1096
      %1098 = vrot.lane.b32.xlu0 %v430, 92
      %v1099 = vpop.permute.xlu0 %1098
      %1100 = vrot.lane.b32.xlu0 %v450, 92
      %v1101 = vpop.permute.xlu0 %1100
      %1102 = vrot.lane.b32.xlu0 %v470, 92
      %v1103 = vpop.permute.xlu0 %1102
      %vm1104 = vcmask 752640
      %v1105 = vsel %vm1104, %v1097, %v1099
      %v1106 = vsel %vm1104, %v1099, %v1101
      %v1107 = vsel %vm1104, %v1101, %v1103
      %v1113 = vsel %vm489, %v475, 0
      %1115 = vmatpush.msra.mxu0 0.0
      %1116 = vmatpush.msra.mxu0 0.0
      %1117 = vmatpush.msra.mxu0 0.0
      %1118 = vmatpush.msra.mxu0 0.0
      %1119 = vmatpush.msra.mxu0 0.0
      %1120 = vmatpush.msra.mxu0 0.0
      %1121 = vmatpush.msra.mxu0 0.0
      %1122 = vmatpush.msra.mxu0 0.0
      %1123 = vmatpush.msra.mxu0 0.0
      %1124 = vmatpush.msra.mxu0 0.0
      %1125 = vmatpush.msra.mxu0 0.0
      %1126 = vmatpush.msra.mxu0 0.0
      %1127 = vmatpush.msra.mxu0 0.0
      %1128 = vmatpush.msra.mxu0 0.0
      %1129 = vmatpush.msra.mxu0 0.0
      %1130 = vmatpush.msra.mxu0 %v1105
      %1131 = vmatmul.f32.gmra.mxu0 %v1113
      %v1132 = vpop.f32.mrf.mxu0
      %v1133 = vadd.f32 0.0, %v1132
      %1134 = vdwg.mxu0
      %1135 = vmatpush.msra.mxu0 0.0
      %1136 = vmatpush.msra.mxu0 0.0
      %1137 = vmatpush.msra.mxu0 0.0
      %1138 = vmatpush.msra.mxu0 0.0
      %1139 = vmatpush.msra.mxu0 0.0
      %1140 = vmatpush.msra.mxu0 0.0
      %1141 = vmatpush.msra.mxu0 0.0
      %1142 = vmatpush.msra.mxu0 0.0
      %1143 = vmatpush.msra.mxu0 0.0
      %1144 = vmatpush.msra.mxu0 0.0
      %1145 = vmatpush.msra.mxu0 0.0
      %1146 = vmatpush.msra.mxu0 0.0
      %1147 = vmatpush.msra.mxu0 0.0
      %1148 = vmatpush.msra.mxu0 0.0
      %1149 = vmatpush.msra.mxu0 0.0
      %1150 = vmatpush.msra.mxu0 %v1106
      %1151 = vmatmul.f32.gmra.mxu0 %v1113
      %v1152 = vpop.f32.mrf.mxu0
      %v1153 = vadd.f32 0.0, %v1152
      %1154 = vdwg.mxu0
      %1155 = vmatpush.msra.mxu0 0.0
      %1156 = vmatpush.msra.mxu0 0.0
      %1157 = vmatpush.msra.mxu0 0.0
      %1158 = vmatpush.msra.mxu0 0.0
      %1159 = vmatpush.msra.mxu0 0.0
      %1160 = vmatpush.msra.mxu0 0.0
      %1161 = vmatpush.msra.mxu0 0.0
      %1162 = vmatpush.msra.mxu0 0.0
      %1163 = vmatpush.msra.mxu0 0.0
      %1164 = vmatpush.msra.mxu0 0.0
      %1165 = vmatpush.msra.mxu0 0.0
      %1166 = vmatpush.msra.mxu0 0.0
      %1167 = vmatpush.msra.mxu0 0.0
      %1168 = vmatpush.msra.mxu0 0.0
      %1169 = vmatpush.msra.mxu0 0.0
      %1170 = vmatpush.msra.mxu0 %v1107
      %1171 = vmatmul.f32.gmra.mxu0 %v1113
      %v1172 = vpop.f32.mrf.mxu0
      %v1173 = vadd.f32 0.0, %v1172
      %1174 = vdwg.mxu0
      %1175 = vmatpush.msra.mxu0 0.0
      %1176 = vmatpush.msra.mxu0 0.0
      %1177 = vmatpush.msra.mxu0 0.0
      %1178 = vmatpush.msra.mxu0 0.0
      %1179 = vmatpush.msra.mxu0 0.0
      %1180 = vmatpush.msra.mxu0 0.0
      %1181 = vmatpush.msra.mxu0 0.0
      %1182 = vmatpush.msra.mxu0 0.0
      %1183 = vmatpush.msra.mxu0 0.0
      %1184 = vmatpush.msra.mxu0 0.0
      %1185 = vmatpush.msra.mxu0 0.0
      %1186 = vmatpush.msra.mxu0 0.0
      %1187 = vmatpush.msra.mxu0 0.0
      %1188 = vmatpush.msra.mxu0 0.0
      %1189 = vmatpush.msra.mxu0 0.0
      %1190 = vmatpush.msra.mxu0 %v1103
      %1191 = vmatmul.f32.gmra.mxu0 %v1113
      %v1192 = vpop.f32.mrf.mxu0
      %v1193 = vadd.f32 0.0, %v1192
      %1194 = vdwg.mxu0
      %v1195 = vadd.f32 %v1092, %v1133
      %v1196 = vadd.f32 %v1093, %v1153
      %v1197 = vadd.f32 %v1094, %v1173
      %v1198 = vadd.f32 %v1095, %v1193
      %v1199 = vrot.slane %v475, 4
      %1200 = vrot.lane.b32.xlu0 %v410, 91
      %v1201 = vpop.permute.xlu0 %1200
      %1202 = vrot.lane.b32.xlu0 %v430, 91
      %v1203 = vpop.permute.xlu0 %1202
      %1204 = vrot.lane.b32.xlu0 %v450, 91
      %v1205 = vpop.permute.xlu0 %1204
      %1206 = vrot.lane.b32.xlu0 %v470, 91
      %v1207 = vpop.permute.xlu0 %1206
      %vm1208 = vcmask 744448
      %v1209 = vsel %vm1208, %v1201, %v1203
      %v1210 = vsel %vm1208, %v1203, %v1205
      %v1211 = vsel %vm1208, %v1205, %v1207
      %v1216 = vsel %vm489, %v1199, 0
      %1218 = vmatpush.msra.mxu0 0.0
      %1219 = vmatpush.msra.mxu0 0.0
      %1220 = vmatpush.msra.mxu0 0.0
      %1221 = vmatpush.msra.mxu0 0.0
      %1222 = vmatpush.msra.mxu0 0.0
      %1223 = vmatpush.msra.mxu0 0.0
      %1224 = vmatpush.msra.mxu0 0.0
      %1225 = vmatpush.msra.mxu0 0.0
      %1226 = vmatpush.msra.mxu0 0.0
      %1227 = vmatpush.msra.mxu0 0.0
      %1228 = vmatpush.msra.mxu0 0.0
      %1229 = vmatpush.msra.mxu0 0.0
      %1230 = vmatpush.msra.mxu0 0.0
      %1231 = vmatpush.msra.mxu0 0.0
      %1232 = vmatpush.msra.mxu0 0.0
      %1233 = vmatpush.msra.mxu0 %v1209
      %1234 = vmatmul.f32.gmra.mxu0 %v1216
      %v1235 = vpop.f32.mrf.mxu0
      %v1236 = vadd.f32 0.0, %v1235
      %1237 = vdwg.mxu0
      %1238 = vmatpush.msra.mxu0 0.0
      %1239 = vmatpush.msra.mxu0 0.0
      %1240 = vmatpush.msra.mxu0 0.0
      %1241 = vmatpush.msra.mxu0 0.0
      %1242 = vmatpush.msra.mxu0 0.0
      %1243 = vmatpush.msra.mxu0 0.0
      %1244 = vmatpush.msra.mxu0 0.0
      %1245 = vmatpush.msra.mxu0 0.0
      %1246 = vmatpush.msra.mxu0 0.0
      %1247 = vmatpush.msra.mxu0 0.0
      %1248 = vmatpush.msra.mxu0 0.0
      %1249 = vmatpush.msra.mxu0 0.0
      %1250 = vmatpush.msra.mxu0 0.0
      %1251 = vmatpush.msra.mxu0 0.0
      %1252 = vmatpush.msra.mxu0 0.0
      %1253 = vmatpush.msra.mxu0 %v1210
      %1254 = vmatmul.f32.gmra.mxu0 %v1216
      %v1255 = vpop.f32.mrf.mxu0
      %v1256 = vadd.f32 0.0, %v1255
      %1257 = vdwg.mxu0
      %1258 = vmatpush.msra.mxu0 0.0
      %1259 = vmatpush.msra.mxu0 0.0
      %1260 = vmatpush.msra.mxu0 0.0
      %1261 = vmatpush.msra.mxu0 0.0
      %1262 = vmatpush.msra.mxu0 0.0
      %1263 = vmatpush.msra.mxu0 0.0
      %1264 = vmatpush.msra.mxu0 0.0
      %1265 = vmatpush.msra.mxu0 0.0
      %1266 = vmatpush.msra.mxu0 0.0
      %1267 = vmatpush.msra.mxu0 0.0
      %1268 = vmatpush.msra.mxu0 0.0
      %1269 = vmatpush.msra.mxu0 0.0
      %1270 = vmatpush.msra.mxu0 0.0
      %1271 = vmatpush.msra.mxu0 0.0
      %1272 = vmatpush.msra.mxu0 0.0
      %1273 = vmatpush.msra.mxu0 %v1211
      %1274 = vmatmul.f32.gmra.mxu0 %v1216
      %v1275 = vpop.f32.mrf.mxu0
      %v1276 = vadd.f32 0.0, %v1275
      %1277 = vdwg.mxu0
      %1278 = vmatpush.msra.mxu0 0.0
      %1279 = vmatpush.msra.mxu0 0.0
      %1280 = vmatpush.msra.mxu0 0.0
      %1281 = vmatpush.msra.mxu0 0.0
      %1282 = vmatpush.msra.mxu0 0.0
      %1283 = vmatpush.msra.mxu0 0.0
      %1284 = vmatpush.msra.mxu0 0.0
      %1285 = vmatpush.msra.mxu0 0.0
      %1286 = vmatpush.msra.mxu0 0.0
      %1287 = vmatpush.msra.mxu0 0.0
      %1288 = vmatpush.msra.mxu0 0.0
      %1289 = vmatpush.msra.mxu0 0.0
      %1290 = vmatpush.msra.mxu0 0.0
      %1291 = vmatpush.msra.mxu0 0.0
      %1292 = vmatpush.msra.mxu0 0.0
      %1293 = vmatpush.msra.mxu0 %v1207
      %1294 = vmatmul.f32.gmra.mxu0 %v1216
      %v1295 = vpop.f32.mrf.mxu0
      %v1296 = vadd.f32 0.0, %v1295
      %1297 = vdwg.mxu0
      %v1298 = vadd.f32 %v1195, %v1236
      %v1299 = vadd.f32 %v1196, %v1256
      %v1300 = vadd.f32 %v1197, %v1276
      %v1301 = vadd.f32 %v1198, %v1296
      %1302 = vrot.lane.b32.xlu0 %v410, 90
      %v1303 = vpop.permute.xlu0 %1302
      %1304 = vrot.lane.b32.xlu0 %v430, 90
      %v1305 = vpop.permute.xlu0 %1304
      %1306 = vrot.lane.b32.xlu0 %v450, 90
      %v1307 = vpop.permute.xlu0 %1306
      %1308 = vrot.lane.b32.xlu0 %v470, 90
      %v1309 = vpop.permute.xlu0 %1308
      %vm1310 = vcmask 736256
      %v1311 = vsel %vm1310, %v1303, %v1305
      %v1312 = vsel %vm1310, %v1305, %v1307
      %v1313 = vsel %vm1310, %v1307, %v1309
      %v1319 = vsel %vm489, %v476, 0
      %1321 = vmatpush.msra.mxu0 0.0
      %1322 = vmatpush.msra.mxu0 0.0
      %1323 = vmatpush.msra.mxu0 0.0
      %1324 = vmatpush.msra.mxu0 0.0
      %1325 = vmatpush.msra.mxu0 0.0
      %1326 = vmatpush.msra.mxu0 0.0
      %1327 = vmatpush.msra.mxu0 0.0
      %1328 = vmatpush.msra.mxu0 0.0
      %1329 = vmatpush.msra.mxu0 0.0
      %1330 = vmatpush.msra.mxu0 0.0
      %1331 = vmatpush.msra.mxu0 0.0
      %1332 = vmatpush.msra.mxu0 0.0
      %1333 = vmatpush.msra.mxu0 0.0
      %1334 = vmatpush.msra.mxu0 0.0
      %1335 = vmatpush.msra.mxu0 0.0
      %1336 = vmatpush.msra.mxu0 %v1311
      %1337 = vmatmul.f32.gmra.mxu0 %v1319
      %v1338 = vpop.f32.mrf.mxu0
      %v1339 = vadd.f32 0.0, %v1338
      %1340 = vdwg.mxu0
      %1341 = vmatpush.msra.mxu0 0.0
      %1342 = vmatpush.msra.mxu0 0.0
      %1343 = vmatpush.msra.mxu0 0.0
      %1344 = vmatpush.msra.mxu0 0.0
      %1345 = vmatpush.msra.mxu0 0.0
      %1346 = vmatpush.msra.mxu0 0.0
      %1347 = vmatpush.msra.mxu0 0.0
      %1348 = vmatpush.msra.mxu0 0.0
      %1349 = vmatpush.msra.mxu0 0.0
      %1350 = vmatpush.msra.mxu0 0.0
      %1351 = vmatpush.msra.mxu0 0.0
      %1352 = vmatpush.msra.mxu0 0.0
      %1353 = vmatpush.msra.mxu0 0.0
      %1354 = vmatpush.msra.mxu0 0.0
      %1355 = vmatpush.msra.mxu0 0.0
      %1356 = vmatpush.msra.mxu0 %v1312
      %1357 = vmatmul.f32.gmra.mxu0 %v1319
      %v1358 = vpop.f32.mrf.mxu0
      %v1359 = vadd.f32 0.0, %v1358
      %1360 = vdwg.mxu0
      %1361 = vmatpush.msra.mxu0 0.0
      %1362 = vmatpush.msra.mxu0 0.0
      %1363 = vmatpush.msra.mxu0 0.0
      %1364 = vmatpush.msra.mxu0 0.0
      %1365 = vmatpush.msra.mxu0 0.0
      %1366 = vmatpush.msra.mxu0 0.0
      %1367 = vmatpush.msra.mxu0 0.0
      %1368 = vmatpush.msra.mxu0 0.0
      %1369 = vmatpush.msra.mxu0 0.0
      %1370 = vmatpush.msra.mxu0 0.0
      %1371 = vmatpush.msra.mxu0 0.0
      %1372 = vmatpush.msra.mxu0 0.0
      %1373 = vmatpush.msra.mxu0 0.0
      %1374 = vmatpush.msra.mxu0 0.0
      %1375 = vmatpush.msra.mxu0 0.0
      %1376 = vmatpush.msra.mxu0 %v1313
      %1377 = vmatmul.f32.gmra.mxu0 %v1319
      %v1378 = vpop.f32.mrf.mxu0
      %v1379 = vadd.f32 0.0, %v1378
      %1380 = vdwg.mxu0
      %1381 = vmatpush.msra.mxu0 0.0
      %1382 = vmatpush.msra.mxu0 0.0
      %1383 = vmatpush.msra.mxu0 0.0
      %1384 = vmatpush.msra.mxu0 0.0
      %1385 = vmatpush.msra.mxu0 0.0
      %1386 = vmatpush.msra.mxu0 0.0
      %1387 = vmatpush.msra.mxu0 0.0
      %1388 = vmatpush.msra.mxu0 0.0
      %1389 = vmatpush.msra.mxu0 0.0
      %1390 = vmatpush.msra.mxu0 0.0
      %1391 = vmatpush.msra.mxu0 0.0
      %1392 = vmatpush.msra.mxu0 0.0
      %1393 = vmatpush.msra.mxu0 0.0
      %1394 = vmatpush.msra.mxu0 0.0
      %1395 = vmatpush.msra.mxu0 0.0
      %1396 = vmatpush.msra.mxu0 %v1309
      %1397 = vmatmul.f32.gmra.mxu0 %v1319
      %v1398 = vpop.f32.mrf.mxu0
      %v1399 = vadd.f32 0.0, %v1398
      %1400 = vdwg.mxu0
      %v1401 = vadd.f32 %v1298, %v1339
      %v1402 = vadd.f32 %v1299, %v1359
      %v1403 = vadd.f32 %v1300, %v1379
      %v1404 = vadd.f32 %v1301, %v1399
      %v1405 = vmax.f32 %v1401, 0.0
      %v1406 = vmax.f32 %v1402, 0.0
      %v1407 = vmax.f32 %v1403, 0.0
      %v1408 = vmax.f32 %v1404, 0.0
      %v1410 = vperm.slane %v354, 0
      %v1411 = vperm.slane %v354, 1
      %v1412 = vperm.slane %v354, 2
      %v1413 = vperm.slane %v354, 3
      %v1418 = vmul.f32 %v1405, %v1410
      %v1419 = vmul.f32 %v1406, %v1411
      %v1420 = vmul.f32 %v1407, %v1412
      %v1421 = vmul.f32 %v1408, %v1413
      %v1422 = vld [vmem:[%s6] sm:$0xf]
      %1424 = vset.pattern.permute.xlu0 0
      %1425 = vperm.xlu0 %1424, %v1422
      %v1426 = vpop.permute.xlu0 %1425
      %v1428 = vadd.f32 %v1426, 0.0
      %vm1429 = vcmask 31744
      %v1431 = vsel %vm1429, %v477, 0
      %v1434 = vsel %vm379, %v1418, 0
      %v1437 = vsel %vm379, %v1419, 0
      %v1440 = vsel %vm379, %v1420, 0
      %1442 = vmatpush.msra.mxu0 0.0
      %1443 = vmatpush.msra.mxu0 0.0
      %1444 = vmatpush.msra.mxu0 0.0
      %1445 = vmatpush.msra.mxu0 0.0
      %1446 = vmatpush.msra.mxu0 0.0
      %1447 = vmatpush.msra.mxu0 0.0
      %1448 = vmatpush.msra.mxu0 0.0
      %1449 = vmatpush.msra.mxu0 0.0
      %1450 = vmatpush.msra.mxu0 0.0
      %1451 = vmatpush.msra.mxu0 0.0
      %1452 = vmatpush.msra.mxu0 0.0
      %1453 = vmatpush.msra.mxu0 0.0
      %1454 = vmatpush.msra.mxu0 0.0
      %1455 = vmatpush.msra.mxu0 0.0
      %1456 = vmatpush.msra.mxu0 0.0
      %1457 = vmatpush.msra.mxu0 %v1434
      %1458 = vmatmul.f32.gmra.mxu0 %v1431
      %v1459 = vpop.f32.mrf.mxu0
      %v1460 = vadd.f32 0.0, %v1459
      %1461 = vdwg.mxu0
      %1462 = vmatpush.msra.mxu0 0.0
      %1463 = vmatpush.msra.mxu0 0.0
      %1464 = vmatpush.msra.mxu0 0.0
      %1465 = vmatpush.msra.mxu0 0.0
      %1466 = vmatpush.msra.mxu0 0.0
      %1467 = vmatpush.msra.mxu0 0.0
      %1468 = vmatpush.msra.mxu0 0.0
      %1469 = vmatpush.msra.mxu0 0.0
      %1470 = vmatpush.msra.mxu0 0.0
      %1471 = vmatpush.msra.mxu0 0.0
      %1472 = vmatpush.msra.mxu0 0.0
      %1473 = vmatpush.msra.mxu0 0.0
      %1474 = vmatpush.msra.mxu0 0.0
      %1475 = vmatpush.msra.mxu0 0.0
      %1476 = vmatpush.msra.mxu0 0.0
      %1477 = vmatpush.msra.mxu0 %v1437
      %1478 = vmatmul.f32.gmra.mxu0 %v1431
      %v1479 = vpop.f32.mrf.mxu0
      %v1480 = vadd.f32 0.0, %v1479
      %1481 = vdwg.mxu0
      %1482 = vmatpush.msra.mxu0 0.0
      %1483 = vmatpush.msra.mxu0 0.0
      %1484 = vmatpush.msra.mxu0 0.0
      %1485 = vmatpush.msra.mxu0 0.0
      %1486 = vmatpush.msra.mxu0 0.0
      %1487 = vmatpush.msra.mxu0 0.0
      %1488 = vmatpush.msra.mxu0 0.0
      %1489 = vmatpush.msra.mxu0 0.0
      %1490 = vmatpush.msra.mxu0 0.0
      %1491 = vmatpush.msra.mxu0 0.0
      %1492 = vmatpush.msra.mxu0 0.0
      %1493 = vmatpush.msra.mxu0 0.0
      %1494 = vmatpush.msra.mxu0 0.0
      %1495 = vmatpush.msra.mxu0 0.0
      %1496 = vmatpush.msra.mxu0 0.0
      %1497 = vmatpush.msra.mxu0 %v1440
      %1498 = vmatmul.f32.gmra.mxu0 %v1431
      %v1499 = vpop.f32.mrf.mxu0
      %v1500 = vadd.f32 0.0, %v1499
      %1501 = vdwg.mxu0
      %v1502 = vadd.f32 %v1428, %v1460
      %v1503 = vadd.f32 %v1428, %v1480
      %v1504 = vadd.f32 %v1428, %v1500
      %v1505 = vrot.slane %v477, 4
      %1507 = vrot.lane.b32.xlu0 %v1418, 127
      %v1508 = vpop.permute.xlu0 %1507
      %1509 = vrot.lane.b32.xlu0 %v1419, 127
      %v1510 = vpop.permute.xlu0 %1509
      %1511 = vrot.lane.b32.xlu0 %v1420, 127
      %v1512 = vpop.permute.xlu0 %1511
      %1513 = vrot.lane.b32.xlu0 %v1421, 127
      %v1514 = vpop.permute.xlu0 %1513
      %v1515 = vsel %vm590, %v1508, %v1510
      %v1516 = vsel %vm590, %v1510, %v1512
      %v1517 = vsel %vm590, %v1512, %v1514
      %v1518 = vsel %vm1429, %v1505, 0
      %v1520 = vsel %vm379, %v1515, 0
      %v1522 = vsel %vm379, %v1516, 0
      %v1524 = vsel %vm379, %v1517, 0
      %1526 = vmatpush.msra.mxu0 0.0
      %1527 = vmatpush.msra.mxu0 0.0
      %1528 = vmatpush.msra.mxu0 0.0
      %1529 = vmatpush.msra.mxu0 0.0
      %1530 = vmatpush.msra.mxu0 0.0
      %1531 = vmatpush.msra.mxu0 0.0
      %1532 = vmatpush.msra.mxu0 0.0
      %1533 = vmatpush.msra.mxu0 0.0
      %1534 = vmatpush.msra.mxu0 0.0
      %1535 = vmatpush.msra.mxu0 0.0
      %1536 = vmatpush.msra.mxu0 0.0
      %1537 = vmatpush.msra.mxu0 0.0
      %1538 = vmatpush.msra.mxu0 0.0
      %1539 = vmatpush.msra.mxu0 0.0
      %1540 = vmatpush.msra.mxu0 0.0
      %1541 = vmatpush.msra.mxu0 %v1520
      %1542 = vmatmul.f32.gmra.mxu0 %v1518
      %v1543 = vpop.f32.mrf.mxu0
      %v1544 = vadd.f32 0.0, %v1543
      %1545 = vdwg.mxu0
      %1546 = vmatpush.msra.mxu0 0.0
      %1547 = vmatpush.msra.mxu0 0.0
      %1548 = vmatpush.msra.mxu0 0.0
      %1549 = vmatpush.msra.mxu0 0.0
      %1550 = vmatpush.msra.mxu0 0.0
      %1551 = vmatpush.msra.mxu0 0.0
      %1552 = vmatpush.msra.mxu0 0.0
      %1553 = vmatpush.msra.mxu0 0.0
      %1554 = vmatpush.msra.mxu0 0.0
      %1555 = vmatpush.msra.mxu0 0.0
      %1556 = vmatpush.msra.mxu0 0.0
      %1557 = vmatpush.msra.mxu0 0.0
      %1558 = vmatpush.msra.mxu0 0.0
      %1559 = vmatpush.msra.mxu0 0.0
      %1560 = vmatpush.msra.mxu0 0.0
      %1561 = vmatpush.msra.mxu0 %v1522
      %1562 = vmatmul.f32.gmra.mxu0 %v1518
      %v1563 = vpop.f32.mrf.mxu0
      %v1564 = vadd.f32 0.0, %v1563
      %1565 = vdwg.mxu0
      %1566 = vmatpush.msra.mxu0 0.0
      %1567 = vmatpush.msra.mxu0 0.0
      %1568 = vmatpush.msra.mxu0 0.0
      %1569 = vmatpush.msra.mxu0 0.0
      %1570 = vmatpush.msra.mxu0 0.0
      %1571 = vmatpush.msra.mxu0 0.0
      %1572 = vmatpush.msra.mxu0 0.0
      %1573 = vmatpush.msra.mxu0 0.0
      %1574 = vmatpush.msra.mxu0 0.0
      %1575 = vmatpush.msra.mxu0 0.0
      %1576 = vmatpush.msra.mxu0 0.0
      %1577 = vmatpush.msra.mxu0 0.0
      %1578 = vmatpush.msra.mxu0 0.0
      %1579 = vmatpush.msra.mxu0 0.0
      %1580 = vmatpush.msra.mxu0 0.0
      %1581 = vmatpush.msra.mxu0 %v1524
      %1582 = vmatmul.f32.gmra.mxu0 %v1518
      %v1583 = vpop.f32.mrf.mxu0
      %v1584 = vadd.f32 0.0, %v1583
      %1585 = vdwg.mxu0
      %v1586 = vadd.f32 %v1502, %v1544
      %v1587 = vadd.f32 %v1503, %v1564
      %v1588 = vadd.f32 %v1504, %v1584
      %1589 = vrot.lane.b32.xlu0 %v1418, 126
      %v1590 = vpop.permute.xlu0 %1589
      %1591 = vrot.lane.b32.xlu0 %v1419, 126
      %v1592 = vpop.permute.xlu0 %1591
      %1593 = vrot.lane.b32.xlu0 %v1420, 126
      %v1594 = vpop.permute.xlu0 %1593
      %1595 = vrot.lane.b32.xlu0 %v1421, 126
      %v1596 = vpop.permute.xlu0 %1595
      %v1597 = vsel %vm692, %v1590, %v1592
      %v1598 = vsel %vm692, %v1592, %v1594
      %v1599 = vsel %vm692, %v1594, %v1596
      %v1601 = vsel %vm1429, %v478, 0
      %v1603 = vsel %vm379, %v1597, 0
      %v1605 = vsel %vm379, %v1598, 0
      %v1607 = vsel %vm379, %v1599, 0
      %1609 = vmatpush.msra.mxu0 0.0
      %1610 = vmatpush.msra.mxu0 0.0
      %1611 = vmatpush.msra.mxu0 0.0
      %1612 = vmatpush.msra.mxu0 0.0
      %1613 = vmatpush.msra.mxu0 0.0
      %1614 = vmatpush.msra.mxu0 0.0
      %1615 = vmatpush.msra.mxu0 0.0
      %1616 = vmatpush.msra.mxu0 0.0
      %1617 = vmatpush.msra.mxu0 0.0
      %1618 = vmatpush.msra.mxu0 0.0
      %1619 = vmatpush.msra.mxu0 0.0
      %1620 = vmatpush.msra.mxu0 0.0
      %1621 = vmatpush.msra.mxu0 0.0
      %1622 = vmatpush.msra.mxu0 0.0
      %1623 = vmatpush.msra.mxu0 0.0
      %1624 = vmatpush.msra.mxu0 %v1603
      %1625 = vmatmul.f32.gmra.mxu0 %v1601
      %v1626 = vpop.f32.mrf.mxu0
      %v1627 = vadd.f32 0.0, %v1626
      %1628 = vdwg.mxu0
      %1629 = vmatpush.msra.mxu0 0.0
      %1630 = vmatpush.msra.mxu0 0.0
      %1631 = vmatpush.msra.mxu0 0.0
      %1632 = vmatpush.msra.mxu0 0.0
      %1633 = vmatpush.msra.mxu0 0.0
      %1634 = vmatpush.msra.mxu0 0.0
      %1635 = vmatpush.msra.mxu0 0.0
      %1636 = vmatpush.msra.mxu0 0.0
      %1637 = vmatpush.msra.mxu0 0.0
      %1638 = vmatpush.msra.mxu0 0.0
      %1639 = vmatpush.msra.mxu0 0.0
      %1640 = vmatpush.msra.mxu0 0.0
      %1641 = vmatpush.msra.mxu0 0.0
      %1642 = vmatpush.msra.mxu0 0.0
      %1643 = vmatpush.msra.mxu0 0.0
      %1644 = vmatpush.msra.mxu0 %v1605
      %1645 = vmatmul.f32.gmra.mxu0 %v1601
      %v1646 = vpop.f32.mrf.mxu0
      %v1647 = vadd.f32 0.0, %v1646
      %1648 = vdwg.mxu0
      %1649 = vmatpush.msra.mxu0 0.0
      %1650 = vmatpush.msra.mxu0 0.0
      %1651 = vmatpush.msra.mxu0 0.0
      %1652 = vmatpush.msra.mxu0 0.0
      %1653 = vmatpush.msra.mxu0 0.0
      %1654 = vmatpush.msra.mxu0 0.0
      %1655 = vmatpush.msra.mxu0 0.0
      %1656 = vmatpush.msra.mxu0 0.0
      %1657 = vmatpush.msra.mxu0 0.0
      %1658 = vmatpush.msra.mxu0 0.0
      %1659 = vmatpush.msra.mxu0 0.0
      %1660 = vmatpush.msra.mxu0 0.0
      %1661 = vmatpush.msra.mxu0 0.0
      %1662 = vmatpush.msra.mxu0 0.0
      %1663 = vmatpush.msra.mxu0 0.0
      %1664 = vmatpush.msra.mxu0 %v1607
      %1665 = vmatmul.f32.gmra.mxu0 %v1601
      %v1666 = vpop.f32.mrf.mxu0
      %v1667 = vadd.f32 0.0, %v1666
      %1668 = vdwg.mxu0
      %v1669 = vadd.f32 %v1586, %v1627
      %v1670 = vadd.f32 %v1587, %v1647
      %v1671 = vadd.f32 %v1588, %v1667
      %v1672 = vrot.slane %v478, 4
      %1673 = vrot.lane.b32.xlu0 %v1418, 110
      %v1674 = vpop.permute.xlu0 %1673
      %1675 = vrot.lane.b32.xlu0 %v1419, 110
      %v1676 = vpop.permute.xlu0 %1675
      %1677 = vrot.lane.b32.xlu0 %v1420, 110
      %v1678 = vpop.permute.xlu0 %1677
      %1679 = vrot.lane.b32.xlu0 %v1421, 110
      %v1680 = vpop.permute.xlu0 %1679
      %v1681 = vsel %vm796, %v1674, %v1676
      %v1682 = vsel %vm796, %v1676, %v1678
      %v1683 = vsel %vm796, %v1678, %v1680
      %v1684 = vsel %vm1429, %v1672, 0
      %v1686 = vsel %vm379, %v1681, 0
      %v1688 = vsel %vm379, %v1682, 0
      %v1690 = vsel %vm379, %v1683, 0
      %1692 = vmatpush.msra.mxu0 0.0
      %1693 = vmatpush.msra.mxu0 0.0
      %1694 = vmatpush.msra.mxu0 0.0
      %1695 = vmatpush.msra.mxu0 0.0
      %1696 = vmatpush.msra.mxu0 0.0
      %1697 = vmatpush.msra.mxu0 0.0
      %1698 = vmatpush.msra.mxu0 0.0
      %1699 = vmatpush.msra.mxu0 0.0
      %1700 = vmatpush.msra.mxu0 0.0
      %1701 = vmatpush.msra.mxu0 0.0
      %1702 = vmatpush.msra.mxu0 0.0
      %1703 = vmatpush.msra.mxu0 0.0
      %1704 = vmatpush.msra.mxu0 0.0
      %1705 = vmatpush.msra.mxu0 0.0
      %1706 = vmatpush.msra.mxu0 0.0
      %1707 = vmatpush.msra.mxu0 %v1686
      %1708 = vmatmul.f32.gmra.mxu0 %v1684
      %v1709 = vpop.f32.mrf.mxu0
      %v1710 = vadd.f32 0.0, %v1709
      %1711 = vdwg.mxu0
      %1712 = vmatpush.msra.mxu0 0.0
      %1713 = vmatpush.msra.mxu0 0.0
      %1714 = vmatpush.msra.mxu0 0.0
      %1715 = vmatpush.msra.mxu0 0.0
      %1716 = vmatpush.msra.mxu0 0.0
      %1717 = vmatpush.msra.mxu0 0.0
      %1718 = vmatpush.msra.mxu0 0.0
      %1719 = vmatpush.msra.mxu0 0.0
      %1720 = vmatpush.msra.mxu0 0.0
      %1721 = vmatpush.msra.mxu0 0.0
      %1722 = vmatpush.msra.mxu0 0.0
      %1723 = vmatpush.msra.mxu0 0.0
      %1724 = vmatpush.msra.mxu0 0.0
      %1725 = vmatpush.msra.mxu0 0.0
      %1726 = vmatpush.msra.mxu0 0.0
      %1727 = vmatpush.msra.mxu0 %v1688
      %1728 = vmatmul.f32.gmra.mxu0 %v1684
      %v1729 = vpop.f32.mrf.mxu0
      %v1730 = vadd.f32 0.0, %v1729
      %1731 = vdwg.mxu0
      %1732 = vmatpush.msra.mxu0 0.0
      %1733 = vmatpush.msra.mxu0 0.0
      %1734 = vmatpush.msra.mxu0 0.0
      %1735 = vmatpush.msra.mxu0 0.0
      %1736 = vmatpush.msra.mxu0 0.0
      %1737 = vmatpush.msra.mxu0 0.0
      %1738 = vmatpush.msra.mxu0 0.0
      %1739 = vmatpush.msra.mxu0 0.0
      %1740 = vmatpush.msra.mxu0 0.0
      %1741 = vmatpush.msra.mxu0 0.0
      %1742 = vmatpush.msra.mxu0 0.0
      %1743 = vmatpush.msra.mxu0 0.0
      %1744 = vmatpush.msra.mxu0 0.0
      %1745 = vmatpush.msra.mxu0 0.0
      %1746 = vmatpush.msra.mxu0 0.0
      %1747 = vmatpush.msra.mxu0 %v1690
      %1748 = vmatmul.f32.gmra.mxu0 %v1684
      %v1749 = vpop.f32.mrf.mxu0
      %v1750 = vadd.f32 0.0, %v1749
      %1751 = vdwg.mxu0
      %v1752 = vadd.f32 %v1669, %v1710
      %v1753 = vadd.f32 %v1670, %v1730
      %v1754 = vadd.f32 %v1671, %v1750
      %1755 = vrot.lane.b32.xlu0 %v1418, 109
      %v1756 = vpop.permute.xlu0 %1755
      %1757 = vrot.lane.b32.xlu0 %v1419, 109
      %v1758 = vpop.permute.xlu0 %1757
      %1759 = vrot.lane.b32.xlu0 %v1420, 109
      %v1760 = vpop.permute.xlu0 %1759
      %1761 = vrot.lane.b32.xlu0 %v1421, 109
      %v1762 = vpop.permute.xlu0 %1761
      %v1763 = vsel %vm898, %v1756, %v1758
      %v1764 = vsel %vm898, %v1758, %v1760
      %v1765 = vsel %vm898, %v1760, %v1762
      %v1767 = vsel %vm1429, %v479, 0
      %v1769 = vsel %vm379, %v1763, 0
      %v1771 = vsel %vm379, %v1764, 0
      %v1773 = vsel %vm379, %v1765, 0
      %1775 = vmatpush.msra.mxu0 0.0
      %1776 = vmatpush.msra.mxu0 0.0
      %1777 = vmatpush.msra.mxu0 0.0
      %1778 = vmatpush.msra.mxu0 0.0
      %1779 = vmatpush.msra.mxu0 0.0
      %1780 = vmatpush.msra.mxu0 0.0
      %1781 = vmatpush.msra.mxu0 0.0
      %1782 = vmatpush.msra.mxu0 0.0
      %1783 = vmatpush.msra.mxu0 0.0
      %1784 = vmatpush.msra.mxu0 0.0
      %1785 = vmatpush.msra.mxu0 0.0
      %1786 = vmatpush.msra.mxu0 0.0
      %1787 = vmatpush.msra.mxu0 0.0
      %1788 = vmatpush.msra.mxu0 0.0
      %1789 = vmatpush.msra.mxu0 0.0
      %1790 = vmatpush.msra.mxu0 %v1769
      %1791 = vmatmul.f32.gmra.mxu0 %v1767
      %v1792 = vpop.f32.mrf.mxu0
      %v1793 = vadd.f32 0.0, %v1792
      %1794 = vdwg.mxu0
      %1795 = vmatpush.msra.mxu0 0.0
      %1796 = vmatpush.msra.mxu0 0.0
      %1797 = vmatpush.msra.mxu0 0.0
      %1798 = vmatpush.msra.mxu0 0.0
      %1799 = vmatpush.msra.mxu0 0.0
      %1800 = vmatpush.msra.mxu0 0.0
      %1801 = vmatpush.msra.mxu0 0.0
      %1802 = vmatpush.msra.mxu0 0.0
      %1803 = vmatpush.msra.mxu0 0.0
      %1804 = vmatpush.msra.mxu0 0.0
      %1805 = vmatpush.msra.mxu0 0.0
      %1806 = vmatpush.msra.mxu0 0.0
      %1807 = vmatpush.msra.mxu0 0.0
      %1808 = vmatpush.msra.mxu0 0.0
      %1809 = vmatpush.msra.mxu0 0.0
      %1810 = vmatpush.msra.mxu0 %v1771
      %1811 = vmatmul.f32.gmra.mxu0 %v1767
      %v1812 = vpop.f32.mrf.mxu0
      %v1813 = vadd.f32 0.0, %v1812
      %1814 = vdwg.mxu0
      %1815 = vmatpush.msra.mxu0 0.0
      %1816 = vmatpush.msra.mxu0 0.0
      %1817 = vmatpush.msra.mxu0 0.0
      %1818 = vmatpush.msra.mxu0 0.0
      %1819 = vmatpush.msra.mxu0 0.0
      %1820 = vmatpush.msra.mxu0 0.0
      %1821 = vmatpush.msra.mxu0 0.0
      %1822 = vmatpush.msra.mxu0 0.0
      %1823 = vmatpush.msra.mxu0 0.0
      %1824 = vmatpush.msra.mxu0 0.0
      %1825 = vmatpush.msra.mxu0 0.0
      %1826 = vmatpush.msra.mxu0 0.0
      %1827 = vmatpush.msra.mxu0 0.0
      %1828 = vmatpush.msra.mxu0 0.0
      %1829 = vmatpush.msra.mxu0 0.0
      %1830 = vmatpush.msra.mxu0 %v1773
      %1831 = vmatmul.f32.gmra.mxu0 %v1767
      %v1832 = vpop.f32.mrf.mxu0
      %v1833 = vadd.f32 0.0, %v1832
      %1834 = vdwg.mxu0
      %v1835 = vadd.f32 %v1752, %v1793
      %v1836 = vadd.f32 %v1753, %v1813
      %v1837 = vadd.f32 %v1754, %v1833
      %v1838 = vrot.slane %v479, 4
      %1839 = vrot.lane.b32.xlu0 %v1418, 108
      %v1840 = vpop.permute.xlu0 %1839
      %1841 = vrot.lane.b32.xlu0 %v1419, 108
      %v1842 = vpop.permute.xlu0 %1841
      %1843 = vrot.lane.b32.xlu0 %v1420, 108
      %v1844 = vpop.permute.xlu0 %1843
      %1845 = vrot.lane.b32.xlu0 %v1421, 108
      %v1846 = vpop.permute.xlu0 %1845
      %v1847 = vsel %vm1002, %v1840, %v1842
      %v1848 = vsel %vm1002, %v1842, %v1844
      %v1849 = vsel %vm1002, %v1844, %v1846
      %v1850 = vsel %vm1429, %v1838, 0
      %v1852 = vsel %vm379, %v1847, 0
      %v1854 = vsel %vm379, %v1848, 0
      %v1856 = vsel %vm379, %v1849, 0
      %1858 = vmatpush.msra.mxu0 0.0
      %1859 = vmatpush.msra.mxu0 0.0
      %1860 = vmatpush.msra.mxu0 0.0
      %1861 = vmatpush.msra.mxu0 0.0
      %1862 = vmatpush.msra.mxu0 0.0
      %1863 = vmatpush.msra.mxu0 0.0
      %1864 = vmatpush.msra.mxu0 0.0
      %1865 = vmatpush.msra.mxu0 0.0
      %1866 = vmatpush.msra.mxu0 0.0
      %1867 = vmatpush.msra.mxu0 0.0
      %1868 = vmatpush.msra.mxu0 0.0
      %1869 = vmatpush.msra.mxu0 0.0
      %1870 = vmatpush.msra.mxu0 0.0
      %1871 = vmatpush.msra.mxu0 0.0
      %1872 = vmatpush.msra.mxu0 0.0
      %1873 = vmatpush.msra.mxu0 %v1852
      %1874 = vmatmul.f32.gmra.mxu0 %v1850
      %v1875 = vpop.f32.mrf.mxu0
      %v1876 = vadd.f32 0.0, %v1875
      %1877 = vdwg.mxu0
      %1878 = vmatpush.msra.mxu0 0.0
      %1879 = vmatpush.msra.mxu0 0.0
      %1880 = vmatpush.msra.mxu0 0.0
      %1881 = vmatpush.msra.mxu0 0.0
      %1882 = vmatpush.msra.mxu0 0.0
      %1883 = vmatpush.msra.mxu0 0.0
      %1884 = vmatpush.msra.mxu0 0.0
      %1885 = vmatpush.msra.mxu0 0.0
      %1886 = vmatpush.msra.mxu0 0.0
      %1887 = vmatpush.msra.mxu0 0.0
      %1888 = vmatpush.msra.mxu0 0.0
      %1889 = vmatpush.msra.mxu0 0.0
      %1890 = vmatpush.msra.mxu0 0.0
      %1891 = vmatpush.msra.mxu0 0.0
      %1892 = vmatpush.msra.mxu0 0.0
      %1893 = vmatpush.msra.mxu0 %v1854
      %1894 = vmatmul.f32.gmra.mxu0 %v1850
      %v1895 = vpop.f32.mrf.mxu0
      %v1896 = vadd.f32 0.0, %v1895
      %1897 = vdwg.mxu0
      %1898 = vmatpush.msra.mxu0 0.0
      %1899 = vmatpush.msra.mxu0 0.0
      %1900 = vmatpush.msra.mxu0 0.0
      %1901 = vmatpush.msra.mxu0 0.0
      %1902 = vmatpush.msra.mxu0 0.0
      %1903 = vmatpush.msra.mxu0 0.0
      %1904 = vmatpush.msra.mxu0 0.0
      %1905 = vmatpush.msra.mxu0 0.0
      %1906 = vmatpush.msra.mxu0 0.0
      %1907 = vmatpush.msra.mxu0 0.0
      %1908 = vmatpush.msra.mxu0 0.0
      %1909 = vmatpush.msra.mxu0 0.0
      %1910 = vmatpush.msra.mxu0 0.0
      %1911 = vmatpush.msra.mxu0 0.0
      %1912 = vmatpush.msra.mxu0 0.0
      %1913 = vmatpush.msra.mxu0 %v1856
      %1914 = vmatmul.f32.gmra.mxu0 %v1850
      %v1915 = vpop.f32.mrf.mxu0
      %v1916 = vadd.f32 0.0, %v1915
      %1917 = vdwg.mxu0
      %v1918 = vadd.f32 %v1835, %v1876
      %v1919 = vadd.f32 %v1836, %v1896
      %v1920 = vadd.f32 %v1837, %v1916
      %1921 = vrot.lane.b32.xlu0 %v1418, 92
      %v1922 = vpop.permute.xlu0 %1921
      %1923 = vrot.lane.b32.xlu0 %v1419, 92
      %v1924 = vpop.permute.xlu0 %1923
      %1925 = vrot.lane.b32.xlu0 %v1420, 92
      %v1926 = vpop.permute.xlu0 %1925
      %1927 = vrot.lane.b32.xlu0 %v1421, 92
      %v1928 = vpop.permute.xlu0 %1927
      %v1929 = vsel %vm1104, %v1922, %v1924
      %v1930 = vsel %vm1104, %v1924, %v1926
      %v1931 = vsel %vm1104, %v1926, %v1928
      %v1933 = vsel %vm1429, %v480, 0
      %v1935 = vsel %vm379, %v1929, 0
      %v1937 = vsel %vm379, %v1930, 0
      %v1939 = vsel %vm379, %v1931, 0
      %1941 = vmatpush.msra.mxu0 0.0
      %1942 = vmatpush.msra.mxu0 0.0
      %1943 = vmatpush.msra.mxu0 0.0
      %1944 = vmatpush.msra.mxu0 0.0
      %1945 = vmatpush.msra.mxu0 0.0
      %1946 = vmatpush.msra.mxu0 0.0
      %1947 = vmatpush.msra.mxu0 0.0
      %1948 = vmatpush.msra.mxu0 0.0
      %1949 = vmatpush.msra.mxu0 0.0
      %1950 = vmatpush.msra.mxu0 0.0
      %1951 = vmatpush.msra.mxu0 0.0
      %1952 = vmatpush.msra.mxu0 0.0
      %1953 = vmatpush.msra.mxu0 0.0
      %1954 = vmatpush.msra.mxu0 0.0
      %1955 = vmatpush.msra.mxu0 0.0
      %1956 = vmatpush.msra.mxu0 %v1935
      %1957 = vmatmul.f32.gmra.mxu0 %v1933
      %v1958 = vpop.f32.mrf.mxu0
      %v1959 = vadd.f32 0.0, %v1958
      %1960 = vdwg.mxu0
      %1961 = vmatpush.msra.mxu0 0.0
      %1962 = vmatpush.msra.mxu0 0.0
      %1963 = vmatpush.msra.mxu0 0.0
      %1964 = vmatpush.msra.mxu0 0.0
      %1965 = vmatpush.msra.mxu0 0.0
      %1966 = vmatpush.msra.mxu0 0.0
      %1967 = vmatpush.msra.mxu0 0.0
      %1968 = vmatpush.msra.mxu0 0.0
      %1969 = vmatpush.msra.mxu0 0.0
      %1970 = vmatpush.msra.mxu0 0.0
      %1971 = vmatpush.msra.mxu0 0.0
      %1972 = vmatpush.msra.mxu0 0.0
      %1973 = vmatpush.msra.mxu0 0.0
      %1974 = vmatpush.msra.mxu0 0.0
      %1975 = vmatpush.msra.mxu0 0.0
      %1976 = vmatpush.msra.mxu0 %v1937
      %1977 = vmatmul.f32.gmra.mxu0 %v1933
      %v1978 = vpop.f32.mrf.mxu0
      %v1979 = vadd.f32 0.0, %v1978
      %1980 = vdwg.mxu0
      %1981 = vmatpush.msra.mxu0 0.0
      %1982 = vmatpush.msra.mxu0 0.0
      %1983 = vmatpush.msra.mxu0 0.0
      %1984 = vmatpush.msra.mxu0 0.0
      %1985 = vmatpush.msra.mxu0 0.0
      %1986 = vmatpush.msra.mxu0 0.0
      %1987 = vmatpush.msra.mxu0 0.0
      %1988 = vmatpush.msra.mxu0 0.0
      %1989 = vmatpush.msra.mxu0 0.0
      %1990 = vmatpush.msra.mxu0 0.0
      %1991 = vmatpush.msra.mxu0 0.0
      %1992 = vmatpush.msra.mxu0 0.0
      %1993 = vmatpush.msra.mxu0 0.0
      %1994 = vmatpush.msra.mxu0 0.0
      %1995 = vmatpush.msra.mxu0 0.0
      %1996 = vmatpush.msra.mxu0 %v1939
      %1997 = vmatmul.f32.gmra.mxu0 %v1933
      %v1998 = vpop.f32.mrf.mxu0
      %v1999 = vadd.f32 0.0, %v1998
      %2000 = vdwg.mxu0
      %v2001 = vadd.f32 %v1918, %v1959
      %v2002 = vadd.f32 %v1919, %v1979
      %v2003 = vadd.f32 %v1920, %v1999
      %v2004 = vrot.slane %v480, 4
      %2005 = vrot.lane.b32.xlu0 %v1418, 91
      %v2006 = vpop.permute.xlu0 %2005
      %2007 = vrot.lane.b32.xlu0 %v1419, 91
      %v2008 = vpop.permute.xlu0 %2007
      %2009 = vrot.lane.b32.xlu0 %v1420, 91
      %v2010 = vpop.permute.xlu0 %2009
      %2011 = vrot.lane.b32.xlu0 %v1421, 91
      %v2012 = vpop.permute.xlu0 %2011
      %v2013 = vsel %vm1208, %v2006, %v2008
      %v2014 = vsel %vm1208, %v2008, %v2010
      %v2015 = vsel %vm1208, %v2010, %v2012
      %v2016 = vsel %vm1429, %v2004, 0
      %v2018 = vsel %vm379, %v2013, 0
      %v2020 = vsel %vm379, %v2014, 0
      %v2022 = vsel %vm379, %v2015, 0
      %2024 = vmatpush.msra.mxu0 0.0
      %2025 = vmatpush.msra.mxu0 0.0
      %2026 = vmatpush.msra.mxu0 0.0
      %2027 = vmatpush.msra.mxu0 0.0
      %2028 = vmatpush.msra.mxu0 0.0
      %2029 = vmatpush.msra.mxu0 0.0
      %2030 = vmatpush.msra.mxu0 0.0
      %2031 = vmatpush.msra.mxu0 0.0
      %2032 = vmatpush.msra.mxu0 0.0
      %2033 = vmatpush.msra.mxu0 0.0
      %2034 = vmatpush.msra.mxu0 0.0
      %2035 = vmatpush.msra.mxu0 0.0
      %2036 = vmatpush.msra.mxu0 0.0
      %2037 = vmatpush.msra.mxu0 0.0
      %2038 = vmatpush.msra.mxu0 0.0
      %2039 = vmatpush.msra.mxu0 %v2018
      %2040 = vmatmul.f32.gmra.mxu0 %v2016
      %v2041 = vpop.f32.mrf.mxu0
      %v2042 = vadd.f32 0.0, %v2041
      %2043 = vdwg.mxu0
      %2044 = vmatpush.msra.mxu0 0.0
      %2045 = vmatpush.msra.mxu0 0.0
      %2046 = vmatpush.msra.mxu0 0.0
      %2047 = vmatpush.msra.mxu0 0.0
      %2048 = vmatpush.msra.mxu0 0.0
      %2049 = vmatpush.msra.mxu0 0.0
      %2050 = vmatpush.msra.mxu0 0.0
      %2051 = vmatpush.msra.mxu0 0.0
      %2052 = vmatpush.msra.mxu0 0.0
      %2053 = vmatpush.msra.mxu0 0.0
      %2054 = vmatpush.msra.mxu0 0.0
      %2055 = vmatpush.msra.mxu0 0.0
      %2056 = vmatpush.msra.mxu0 0.0
      %2057 = vmatpush.msra.mxu0 0.0
      %2058 = vmatpush.msra.mxu0 0.0
      %2059 = vmatpush.msra.mxu0 %v2020
      %2060 = vmatmul.f32.gmra.mxu0 %v2016
      %v2061 = vpop.f32.mrf.mxu0
      %v2062 = vadd.f32 0.0, %v2061
      %2063 = vdwg.mxu0
      %2064 = vmatpush.msra.mxu0 0.0
      %2065 = vmatpush.msra.mxu0 0.0
      %2066 = vmatpush.msra.mxu0 0.0
      %2067 = vmatpush.msra.mxu0 0.0
      %2068 = vmatpush.msra.mxu0 0.0
      %2069 = vmatpush.msra.mxu0 0.0
      %2070 = vmatpush.msra.mxu0 0.0
      %2071 = vmatpush.msra.mxu0 0.0
      %2072 = vmatpush.msra.mxu0 0.0
      %2073 = vmatpush.msra.mxu0 0.0
      %2074 = vmatpush.msra.mxu0 0.0
      %2075 = vmatpush.msra.mxu0 0.0
      %2076 = vmatpush.msra.mxu0 0.0
      %2077 = vmatpush.msra.mxu0 0.0
      %2078 = vmatpush.msra.mxu0 0.0
      %2079 = vmatpush.msra.mxu0 %v2022
      %2080 = vmatmul.f32.gmra.mxu0 %v2016
      %v2081 = vpop.f32.mrf.mxu0
      %v2082 = vadd.f32 0.0, %v2081
      %2083 = vdwg.mxu0
      %v2084 = vadd.f32 %v2001, %v2042
      %v2085 = vadd.f32 %v2002, %v2062
      %v2086 = vadd.f32 %v2003, %v2082
      %2087 = vrot.lane.b32.xlu0 %v1418, 90
      %v2088 = vpop.permute.xlu0 %2087
      %2089 = vrot.lane.b32.xlu0 %v1419, 90
      %v2090 = vpop.permute.xlu0 %2089
      %2091 = vrot.lane.b32.xlu0 %v1420, 90
      %v2092 = vpop.permute.xlu0 %2091
      %2093 = vrot.lane.b32.xlu0 %v1421, 90
      %v2094 = vpop.permute.xlu0 %2093
      %v2095 = vsel %vm1310, %v2088, %v2090
      %v2096 = vsel %vm1310, %v2090, %v2092
      %v2097 = vsel %vm1310, %v2092, %v2094
      %v2099 = vsel %vm1429, %v481, 0
      %v2101 = vsel %vm379, %v2095, 0
      %v2103 = vsel %vm379, %v2096, 0
      %v2105 = vsel %vm379, %v2097, 0
      %2107 = vmatpush.msra.mxu0 0.0
      %2108 = vmatpush.msra.mxu0 0.0
      %2109 = vmatpush.msra.mxu0 0.0
      %2110 = vmatpush.msra.mxu0 0.0
      %2111 = vmatpush.msra.mxu0 0.0
      %2112 = vmatpush.msra.mxu0 0.0
      %2113 = vmatpush.msra.mxu0 0.0
      %2114 = vmatpush.msra.mxu0 0.0
      %2115 = vmatpush.msra.mxu0 0.0
      %2116 = vmatpush.msra.mxu0 0.0
      %2117 = vmatpush.msra.mxu0 0.0
      %2118 = vmatpush.msra.mxu0 0.0
      %2119 = vmatpush.msra.mxu0 0.0
      %2120 = vmatpush.msra.mxu0 0.0
      %2121 = vmatpush.msra.mxu0 0.0
      %2122 = vmatpush.msra.mxu0 %v2101
      %2123 = vmatmul.f32.gmra.mxu0 %v2099
      %v2124 = vpop.f32.mrf.mxu0
      %v2125 = vadd.f32 0.0, %v2124
      %2126 = vdwg.mxu0
      %2127 = vmatpush.msra.mxu0 0.0
      %2128 = vmatpush.msra.mxu0 0.0
      %2129 = vmatpush.msra.mxu0 0.0
      %2130 = vmatpush.msra.mxu0 0.0
      %2131 = vmatpush.msra.mxu0 0.0
      %2132 = vmatpush.msra.mxu0 0.0
      %2133 = vmatpush.msra.mxu0 0.0
      %2134 = vmatpush.msra.mxu0 0.0
      %2135 = vmatpush.msra.mxu0 0.0
      %2136 = vmatpush.msra.mxu0 0.0
      %2137 = vmatpush.msra.mxu0 0.0
      %2138 = vmatpush.msra.mxu0 0.0
      %2139 = vmatpush.msra.mxu0 0.0
      %2140 = vmatpush.msra.mxu0 0.0
      %2141 = vmatpush.msra.mxu0 0.0
      %2142 = vmatpush.msra.mxu0 %v2103
      %2143 = vmatmul.f32.gmra.mxu0 %v2099
      %v2144 = vpop.f32.mrf.mxu0
      %v2145 = vadd.f32 0.0, %v2144
      %2146 = vdwg.mxu0
      %2147 = vmatpush.msra.mxu0 0.0
      %2148 = vmatpush.msra.mxu0 0.0
      %2149 = vmatpush.msra.mxu0 0.0
      %2150 = vmatpush.msra.mxu0 0.0
      %2151 = vmatpush.msra.mxu0 0.0
      %2152 = vmatpush.msra.mxu0 0.0
      %2153 = vmatpush.msra.mxu0 0.0
      %2154 = vmatpush.msra.mxu0 0.0
      %2155 = vmatpush.msra.mxu0 0.0
      %2156 = vmatpush.msra.mxu0 0.0
      %2157 = vmatpush.msra.mxu0 0.0
      %2158 = vmatpush.msra.mxu0 0.0
      %2159 = vmatpush.msra.mxu0 0.0
      %2160 = vmatpush.msra.mxu0 0.0
      %2161 = vmatpush.msra.mxu0 0.0
      %2162 = vmatpush.msra.mxu0 %v2105
      %2163 = vmatmul.f32.gmra.mxu0 %v2099
      %v2164 = vpop.f32.mrf.mxu0
      %v2165 = vadd.f32 0.0, %v2164
      %2166 = vdwg.mxu0
      %v2167 = vadd.f32 %v2084, %v2125
      %v2168 = vadd.f32 %v2085, %v2145
      %v2169 = vadd.f32 %v2086, %v2165
      %v2170 = vmax.f32 %v2167, 0.0
      %v2171 = vmax.f32 %v2168, 0.0
      %v2172 = vmax.f32 %v2169, 0.0
      %v2175 = vrot.slane %v2171, 4
      %v2176 = vsel %vm379, %v2170, %v2175
      %2178 = vst [vmem:[%s332] sm:$0xff] %v2176
      %2179 = vst [vmem:[%s332 + $0x8] sm:$0xf] %v2172
      %p2180 = scmp.lt.s32.totalorder %s20, 1
      %s2181 = scalar_select %p2180, %s20, 1
      %s2182 = smul.addr %s2181, 3
      %s2183 = smul.addr %s2182, 4
      %s2184 = scalar_lea.vmem %s9, %s2183
      // Predicated region
      $region57: #{unet_up_forward.1} parent=55 // pred_check
        %p2185 = pneg %p232
      $region58: #{unet_up_forward.1} parent=55 // pred_check_branch
        %2187 = sbr.rel (%p2185) target = $region60
      $region59: #{unet_up_forward.1} parent=55 // pred_region
        _
      $region60: #{unet_up_forward.1} parent=55 // pred_fallthru
        _
    $region56: #{unet_up_forward.1} parent=5 // pred_fallthru
      _
    %p2188 = scmp.le.s32.totalorder 2, %s15
    // Predicated region
    $region61: #{unet_up_forward.1} parent=5 // pred_check
      %p2189 = pneg %p2188
    $region62: #{unet_up_forward.1} parent=5 // pred_check_branch
      %2191 = sbr.rel (%p2189) target = $region64
    $region63: #{unet_up_forward.1} parent=5 // pred_region
      %s2192 = ssub.s32 %s15, 2
      // Predicated region
      $region65: #{unet_up_forward.1} parent=63 // pred_check
        %p2193 = pneg %p238
      $region66: #{unet_up_forward.1} parent=63 // pred_check_branch
        %2195 = sbr.rel (%p2193) target = $region68
      $region67: #{unet_up_forward.1} parent=63 // pred_region
        %p2196 = scmp.lt.s32.totalorder %s21, 1
        %s2197 = scalar_select %p2196, %s21, 1
        %s2198 = smul.addr %s2197, 3
        %s2199 = smul.addr %s2198, 4
        %s2200 = scalar_lea.vmem %s9, %s2199
      $region68: #{unet_up_forward.1} parent=63 // pred_fallthru
        _
    $region64: #{unet_up_forward.1} parent=5 // pred_fallthru
      _
  $region6: #{unet_up_forward.1} parent=0 // loop_footer
    %s19 = sadd.s32 1, %s15
  $region7: #{unet_up_forward.1} parent=0 // loop_footer_branch
    %14 = sbr.rel target = $region3
  $region8: #{unet_up_forward.1} parent=0 // loop_exit
    _

</llo_original>
